<compile_context>
chip_gen: v7x
topology: tpu7x:2x2x1
jax: 0.10.0
libtpu: 0.0.40
codegen_flags: <defaults>
</compile_context>

<pallas_src>
import functools
import itertools

import numpy as np
import jax
import jax.numpy as jnp
from jax.experimental import pallas as pl
from jax.experimental.pallas import tpu as pltpu

# ----------------------------- configuration --------------------------------
B = 2                 # batch size
Q = 8                 # number of object queries per image
NUM_CLASSES = 5       # foreground classes (sigmoid / VFL head -> C logits)
NT = 3                # ground-truth boxes per image (fixed; see TODO above)
NUM_AUX = 2           # number of aux (deep-supervision) prediction levels

# matcher (HungarianMatcher, focal class cost) hyper-parameters
MATCH_W_CLASS, MATCH_W_BBOX, MATCH_W_GIOU = 2.0, 5.0, 2.0
MATCH_ALPHA = 0.25    # matcher focal alpha (gamma = 2 hard-coded as squares)

# SetCriterion hyper-parameters (defaults from the module)
FOCAL_ALPHA = 0.75    # focal_alpha for the VFL weight (focal_gamma = 2 hard-coded)
WEIGHT_DICT = {"loss_vfl": 1.0, "loss_bbox": 5.0, "loss_giou": 2.0}

EPS = 1e-9


# ------------------------- shared math helpers -------------------------------
def _xyxy_cols(b):
    """cxcywh box tensor (N, 4) -> (x0, y0, x1, y1) column tensors (N, 1)."""
    cx, cy, w, h = b[:, 0:1], b[:, 1:2], b[:, 2:3], b[:, 3:4]
    return cx - 0.5 * w, cy - 0.5 * h, cx + 0.5 * w, cy + 0.5 * h


def _xyxy_rows(bT):
    """Transposed cxcywh box tensor (4, N) -> (x0, y0, x1, y1) row tensors (1, N)."""
    cx, cy, w, h = bT[0:1, :], bT[1:2, :], bT[2:3, :], bT[3:4, :]
    return cx - 0.5 * w, cy - 0.5 * h, cx + 0.5 * w, cy + 0.5 * h


def _iou_giou(a, b):
    """Broadcast IoU and GIoU between xyxy column/row tuples."""
    ax0, ay0, ax1, ay1 = a
    bx0, by0, bx1, by1 = b
    iw = jnp.maximum(jnp.minimum(ax1, bx1) - jnp.maximum(ax0, bx0), 0.0)
    ih = jnp.maximum(jnp.minimum(ay1, by1) - jnp.maximum(ay0, by0), 0.0)
    inter = iw * ih
    area_a = (ax1 - ax0) * (ay1 - ay0)
    area_b = (bx1 - bx0) * (by1 - by0)
    union = area_a + area_b - inter
    iou = inter / (union + EPS)
    cw = jnp.maximum(ax1, bx1) - jnp.minimum(ax0, bx0)
    ch = jnp.maximum(ay1, by1) - jnp.minimum(ay0, by0)
    carea = cw * ch
    giou = iou - (carea - union) / (carea + EPS)
    return iou, giou


def _sigmoid(x):
    return 1.0 / (1.0 + jnp.exp(-x))


def _focal_class_cost(logits):
    """RT-DETR focal matcher class-cost table (Q, C): pos_cost - neg_cost (gamma=2)."""
    p = _sigmoid(logits)
    neg = (1.0 - MATCH_ALPHA) * (p * p) * (-jnp.log(1.0 - p + 1e-8))
    pos = MATCH_ALPHA * ((1.0 - p) * (1.0 - p)) * (-jnp.log(p + 1e-8))
    return pos - neg


def _bce_with_logits(x, y):
    """Elementwise binary_cross_entropy_with_logits (reduction='none', no weight)."""
    return jnp.maximum(x, 0.0) - x * y + jnp.log(1.0 + jnp.exp(-jnp.abs(x)))


def _sum11(x):
    """Sum a 2-D tile to a (1, 1) tensor (kept 2-D for TPU-friendly layouts)."""
    return jnp.sum(jnp.sum(x, axis=1, keepdims=True), axis=0, keepdims=True)


# ----------------- static enumeration of injective assignments ---------------
def _build_assignment_candidates(num_queries, num_targets):
    """Static one-hot table of all target->query injective assignments.

    candT[q, t * ncpad + c] == 1.0  iff candidate c assigns target t to query q.
    ncpad is NCAND rounded up to a multiple of 128 so in-kernel lane slices are aligned.
    """
    perms = list(itertools.permutations(range(num_queries), num_targets))
    ncand = len(perms)
    ncpad = ((ncand + 127) // 128) * 128
    cand = np.zeros((num_queries, num_targets * ncpad), np.float32)
    for c, pm in enumerate(perms):
        for t, qi in enumerate(pm):
            cand[qi, t * ncpad + c] = 1.0
    return jnp.asarray(cand), ncand, ncpad, np.asarray(perms, np.int32)


# ------------------------------- Pallas kernel --------------------------------
def _criterion_kernel(logits_ref, boxes_ref, tboxT_ref, tonehot_ref, tonehot_t_ref,
                      candt_ref, out_ref, *, ncand, ncpad, nt, num_classes):
    """One grid step = one (level, image): matcher + assignment + all loss partial sums.

    The (1, 128) loss row is accumulated into out_ref across the batch axis (axis 1 of
    the grid); out_ref is zeroed on the first batch step of each level.
    """
    f32 = jnp.float32
    logits = logits_ref[0, 0].astype(f32)        # (Q, C)
    pboxes = boxes_ref[0, 0].astype(f32)         # (Q, 4)   predicted boxes (cxcywh)
    tboxT = tboxT_ref[0].astype(f32)             # (4, NT)  target boxes (cxcywh, transposed)
    tonehot = tonehot_ref[0].astype(f32)         # (NT, C)  target labels one-hot
    tonehot_t = tonehot_t_ref[0].astype(f32)     # (C, NT)  one-hot transposed

    # ---- vectorized (Q, NT) cost / IoU matrices: no per-target reductions ----
    p_xyxy = _xyxy_cols(pboxes)                  # 4 x (Q, 1)
    t_xyxy = _xyxy_rows(tboxT)                   # 4 x (1, NT)
    iou_qt, giou_qt = _iou_giou(p_xyxy, t_xyxy)  # (Q, NT)

    fc = _focal_class_cost(logits)               # (Q, C)
    cls_qt = jnp.zeros((logits.shape[0], nt), f32)
    for c in range(num_classes):                 # static unroll, pure VPU mul/add
        cls_qt = cls_qt + fc[:, c:c + 1] * tonehot_t[c:c + 1, :]

    l1_qt = jnp.zeros_like(cls_qt)
    for k in range(4):                           # |cxcywh difference|, pure VPU
        l1_qt = l1_qt + jnp.abs(pboxes[:, k:k + 1] - tboxT[k:k + 1, :])

    cost_qt = (MATCH_W_BBOX * l1_qt + MATCH_W_CLASS * cls_qt
               - MATCH_W_GIOU * giou_qt)         # (Q, NT)

    # ---- candidate costs: one fused multiply + ONE sublane reduce ----
    weighted = jnp.concatenate(
        [candt_ref[:, t * ncpad:(t + 1) * ncpad] * cost_qt[:, t:t + 1]
         for t in range(nt)], axis=1)            # (Q, NT*NCPAD), lane-aligned chunks
    cand_full = jnp.sum(weighted, axis=0, keepdims=True)       # (1, NT*NCPAD)
    cand_costs = cand_full[:, 0:ncpad]
    for t in range(1, nt):                       # lane-aligned elementwise adds
        cand_costs = cand_costs + cand_full[:, t * ncpad:(t + 1) * ncpad]

    # ---- exact Hungarian: pick the first minimum-cost candidate (no argmin) ----
    lane = jax.lax.broadcasted_iota(jnp.int32, (1, ncpad), 1).astype(f32)
    cand_costs = cand_costs + jnp.where(lane >= float(ncand), 1e30, 0.0)
    min_cost = jnp.min(cand_costs, axis=1, keepdims=True)
    first = jnp.min(jnp.where(cand_costs <= min_cost, lane, float(ncpad)),
                    axis=1, keepdims=True)
    sel = (lane == first).astype(f32)            # (1, NCPAD) one-hot over candidates

    # ---- decode the assignment with ONE lane reduce: per-query target code ----
    # code[q] = (t + 1) if query q is matched to target t under the chosen candidate,
    # else 0 (each query is matched to at most one target).
    sel_codes = jnp.concatenate([sel * float(t + 1) for t in range(nt)], axis=1)
    code = jnp.sum(candt_ref[...] * sel_codes, axis=1, keepdims=True)   # (Q, 1)

    # ---- matched-pair loss terms straight from the (Q, NT) matrices (pure VPU) ----
    tscore_q = jnp.zeros_like(code)              # (Q, 1) IoU of the matched pair
    pair_l1 = jnp.zeros_like(code)
    pair_giou = jnp.zeros_like(code)
    target_qc = jnp.zeros_like(logits)           # (Q, C) one-hot target (bg row = zeros)
    for t in range(nt):                          # static unroll, no reductions
        m = (code == float(t + 1)).astype(f32)   # (Q, 1) matched-query mask for target t
        tscore_q = tscore_q + m * iou_qt[:, t:t + 1]
        pair_l1 = pair_l1 + m * l1_qt[:, t:t + 1]
        pair_giou = pair_giou + m * giou_qt[:, t:t + 1]
        target_qc = target_qc + m * tonehot[t:t + 1, :]

    l1_sum = _sum11(pair_l1)                     # sum_t |src_box - tgt_box|_1
    giou_sum = float(nt) - _sum11(pair_giou)     # sum_t (1 - giou(pair))

    # ---- varifocal (VFL) classification loss (focal_gamma = 2) ----
    p = _sigmoid(logits)
    target_score = tscore_q * target_qc
    weight = FOCAL_ALPHA * (p * p) * (1.0 - target_qc) + target_score
    vfl_sum = _sum11(weight * _bce_with_logits(logits, target_score))

    # ---- cardinality error: sum_q [argmax_c(logits) != C-1] vs num targets ----
    c = num_classes
    max_fore = jnp.max(logits[:, 0:c - 1], axis=1, keepdims=True)        # (Q, 1)
    card_pred = _sum11((max_fore >= logits[:, c - 1:c]).astype(f32))
    card_err = jnp.abs(card_pred - float(nt))

    # ---- lane-dense (1, 128) row: [vfl, l1, giou, cardinality, 0...] ----
    lane128 = jax.lax.broadcasted_iota(jnp.int32, (1, 128), 1)
    row = jnp.where(lane128 == 0, vfl_sum,
          jnp.where(lane128 == 1, l1_sum,
          jnp.where(lane128 == 2, giou_sum,
          jnp.where(lane128 == 3, card_err, 0.0))))

    # ---- accumulate over the batch axis of the grid ----
    @pl.when(pl.program_id(1) == 0)
    def _():
        out_ref[...] = jnp.zeros_like(out_ref)
    out_ref[0] = out_ref[0] + row


def _criterion_all_levels(logits, boxes, tboxT, tonehot, tonehot_t, candt,
                          ncand, ncpad):
    """ONE fused pallas_call over all prediction levels and the batch.

    logits: (L, B, Q, C), boxes: (L, B, Q, 4). Returns (L, 128) per-level partial sums
    (already summed over the batch inside the kernel).
    """
    nl, bsz, qn, cn = logits.shape
    nt = tonehot.shape[1]
    out = pl.pallas_call(
        functools.partial(_criterion_kernel, ncand=ncand, ncpad=ncpad,
                          nt=nt, num_classes=cn),
        out_shape=jax.ShapeDtypeStruct((nl, 1, 128), jnp.float32),
        grid=(nl, bsz),
        in_specs=[
            pl.BlockSpec((1, 1, qn, cn), lambda l, b: (l, b, 0, 0)),
            pl.BlockSpec((1, 1, qn, 4), lambda l, b: (l, b, 0, 0)),
            pl.BlockSpec((1, 4, nt), lambda l, b: (b, 0, 0)),
            pl.BlockSpec((1, nt, cn), lambda l, b: (b, 0, 0)),
            pl.BlockSpec((1, cn, nt), lambda l, b: (b, 0, 0)),
            pl.BlockSpec((qn, nt * ncpad), lambda l, b: (0, 0)),
        ],
        out_specs=pl.BlockSpec((1, 1, 128), lambda l, b: (l, 0, 0)),
        compiler_params=pltpu.CompilerParams(
            dimension_semantics=("parallel", "arbitrary")),
    )(logits, boxes, tboxT, tonehot, tonehot_t, candt)
    return out[:, 0, :]                          # (L, 128) lane-dense slots


# ------------------------------ SetCriterion forward --------------------------
def set_criterion_forward(outputs, tgt_boxes, tgt_labels, candt, ncand, ncpad,
                          weight_dict=WEIGHT_DICT, deep_supervision=True):
    """JAX/Pallas equivalent of SetCriterion.forward (losses: vfl, boxes, cardinality)."""
    bsz, nt = tgt_labels.shape
    num_classes = outputs["pred_logits"].shape[-1]
    tgt_onehot = jax.nn.one_hot(tgt_labels, num_classes, dtype=jnp.float32)  # (B, NT, C)
    tgt_onehot_t = jnp.swapaxes(tgt_onehot, 1, 2)                            # (B, C, NT)
    tgt_boxes_t = jnp.swapaxes(tgt_boxes, 1, 2)                              # (B, 4, NT)
    # num_boxes = sum(len(t.labels)); (distributed all_reduce is a no-op here); clamp >= 1
    num_boxes = float(max(bsz * nt, 1))

    level_logits = [outputs["pred_logits"]]
    level_boxes = [outputs["pred_boxes"]]
    aux = outputs.get("aux_outputs", []) if deep_supervision else []
    for a in aux:
        level_logits.append(a["pred_logits"])
        level_boxes.append(a["pred_boxes"])
    all_logits = jnp.stack(level_logits, axis=0)     # (L, B, Q, C)
    all_boxes = jnp.stack(level_boxes, axis=0)       # (L, B, Q, 4)

    sums = _criterion_all_levels(all_logits, all_boxes, tgt_boxes_t, tgt_onehot,
                                 tgt_onehot_t, candt, ncand, ncpad)           # (L, 128)

    def level_dict(s):
        return {
            "loss_vfl": s[0] / num_boxes,            # == loss.mean(1).sum() * Q / num_boxes
            "loss_bbox": s[1] / num_boxes,
            "loss_giou": s[2] / num_boxes,
            "cardinality_error": s[3] / bsz,         # F.l1_loss(..., reduction='mean')
        }

    losses = {}
    for k, v in level_dict(sums[0]).items():
        losses[k] = v * weight_dict.get(k, 1.0)
    for i in range(len(aux)):
        for k, v in level_dict(sums[i + 1]).items():
            losses[k + f"_{i}"] = v * weight_dict.get(k, 1.0)
    return losses


# ----------------------- pure-JAX reference (for checking) --------------------
def _reference_level_losses(logits, boxes, tgt_boxes, tgt_onehot, perms, num_boxes):
    bsz, qn, cn = logits.shape
    nt = tgt_boxes.shape[1]
    vfl = l1 = giou_l = card = 0.0
    for b in range(bsz):
        lg, pb, tb, oh = logits[b], boxes[b], tgt_boxes[b], tgt_onehot[b]
        cost_cls = _focal_class_cost(lg) @ oh.T                                  # (Q, NT)
        cost_l1 = jnp.sum(jnp.abs(pb[:, None, :] - tb[None, :, :]), axis=-1)     # (Q, NT)
        pa = _xyxy_cols(pb)
        ta = tuple(x.T for x in _xyxy_cols(tb))
        iou_qt, giou_qt = _iou_giou(pa, ta)                                      # (Q, NT)
        cost = (MATCH_W_BBOX * cost_l1 + MATCH_W_CLASS * cost_cls
                - MATCH_W_GIOU * giou_qt)
        cand_cost = jnp.sum(cost[perms, jnp.arange(nt)[None, :]], axis=1)
        qidx = perms[jnp.argmin(cand_cost)]                                      # (NT,)
        sboxes = pb[qidx]                                                        # (NT, 4)
        iou_d, giou_d = _iou_giou(_xyxy_cols(sboxes), _xyxy_cols(tb))            # (NT, 1)
        target = jnp.zeros((qn, cn), jnp.float32).at[qidx].set(oh)
        tscore = jnp.zeros((qn, 1), jnp.float32).at[qidx].set(iou_d)
        p = _sigmoid(lg)
        target_score = tscore * target
        w = FOCAL_ALPHA * (p * p) * (1.0 - target) + target_score
        vfl = vfl + jnp.sum(w * _bce_with_logits(lg, target_score))
        l1 = l1 + jnp.sum(jnp.abs(sboxes - tb))
        giou_l = giou_l + jnp.sum(1.0 - giou_d)
        max_fore = jnp.max(lg[:, 0:cn - 1], axis=1)
        card_pred = jnp.sum((max_fore >= lg[:, cn - 1]).astype(jnp.float32))
        card = card + jnp.abs(card_pred - float(nt))
    return {"loss_vfl": vfl / num_boxes, "loss_bbox": l1 / num_boxes,
            "loss_giou": giou_l / num_boxes, "cardinality_error": card / bsz}


def reference_forward(outputs, tgt_boxes, tgt_labels, perms, weight_dict=WEIGHT_DICT):
    bsz, nt = tgt_labels.shape
    cn = outputs["pred_logits"].shape[-1]
    oh = jax.nn.one_hot(tgt_labels, cn, dtype=jnp.float32)
    num_boxes = float(max(bsz * nt, 1))
    losses = {}
    for k, v in _reference_level_losses(outputs["pred_logits"], outputs["pred_boxes"],
                                        tgt_boxes, oh, perms, num_boxes).items():
        losses[k] = v * weight_dict.get(k, 1.0)
    for i, aux in enumerate(outputs.get("aux_outputs", [])):
        for k, v in _reference_level_losses(aux["pred_logits"], aux["pred_boxes"],
                                            tgt_boxes, oh, perms, num_boxes).items():
            losses[k + f"_{i}"] = v * weight_dict.get(k, 1.0)
    return losses


# ----------------------------------- main --------------------------------------
if __name__ == "__main__":
    candt, NCAND, NCPAD, perms_np = _build_assignment_candidates(Q, NT)

    key = jax.random.PRNGKey(0)
    ks = jax.random.split(key, 5 + 2 * NUM_AUX)
    pred_logits = jax.random.normal(ks[0], (B, Q, NUM_CLASSES), jnp.float32)
    pred_boxes = jax.nn.sigmoid(jax.random.normal(ks[1], (B, Q, 4), jnp.float32))
    tgt_cxcy = 0.25 + 0.5 * jax.random.uniform(ks[2], (B, NT, 2), jnp.float32)
    tgt_wh = 0.1 + 0.2 * jax.random.uniform(ks[3], (B, NT, 2), jnp.float32)
    tgt_boxes = jnp.concatenate([tgt_cxcy, tgt_wh], axis=-1)          # cxcywh in [0,1]
    tgt_labels = jax.random.randint(ks[4], (B, NT), 0, NUM_CLASSES)

    aux_outputs = []
    for i in range(NUM_AUX):
        aux_outputs.append({
            "pred_logits": jax.random.normal(ks[5 + 2 * i], (B, Q, NUM_CLASSES),
                                             jnp.float32),
            "pred_boxes": jax.nn.sigmoid(jax.random.normal(ks[6 + 2 * i], (B, Q, 4),
                                                           jnp.float32)),
        })

    outputs = {
        "pred_logits": pred_logits,
        "pred_boxes": pred_boxes,
        "aux_outputs": aux_outputs,
    }

    fwd = jax.jit(functools.partial(set_criterion_forward, ncand=NCAND, ncpad=NCPAD))
    losses = fwd(outputs, tgt_boxes, tgt_labels, candt)
    losses = jax.block_until_ready(losses)

    ref = reference_forward(outputs, tgt_boxes, tgt_labels,
                            jnp.asarray(perms_np, jnp.int32))

    expected_keys = {"loss_vfl", "loss_bbox", "loss_giou", "cardinality_error"}
    for i in range(NUM_AUX):
        expected_keys |= {f"loss_vfl_{i}", f"loss_bbox_{i}", f"loss_giou_{i}",
                          f"cardinality_error_{i}"}
    assert set(losses.keys()) == expected_keys, sorted(losses.keys())
    for k, v in losses.items():
        v_f, r_f = float(v), float(ref[k])
        assert np.isfinite(v_f), (k, v_f)
        assert abs(v_f - r_f) <= 1e-3 + 1e-3 * abs(r_f), (k, v_f, r_f)

    print("KERNEL_OK")
</pallas_src>

<mosaic_0001>
module attributes {stable_mosaic.version = 11 : i64} {
  func.func @_criterion_kernel(%arg0: i32, %arg1: i32, %arg2: memref<1x1x8x5xf32, #tpu.memory_space<vmem>>, %arg3: memref<1x1x8x4xf32, #tpu.memory_space<vmem>>, %arg4: memref<1x4x3xf32, #tpu.memory_space<vmem>>, %arg5: memref<1x3x5xf32, #tpu.memory_space<vmem>>, %arg6: memref<1x5x3xf32, #tpu.memory_space<vmem>>, %arg7: memref<8x1152xf32, #tpu.memory_space<vmem>>, %arg8: memref<1x1x128xf32, #tpu.memory_space<vmem>>) attributes {dimension_semantics = [#tpu.dimension_semantics<parallel>, #tpu.dimension_semantics<arbitrary>], iteration_bounds = array<i64: 3, 2>, scalar_prefetch = 0 : i64, scratch_operands = 0 : i64, tpu.core_type = #tpu.core_type<tc>, window_params = [{transform_indices = @transform_0, window_bounds = array<i64: 1, 1, 8, 5>}, {transform_indices = @transform_1, window_bounds = array<i64: 1, 1, 8, 4>}, {transform_indices = @transform_2, window_bounds = array<i64: 1, 4, 3>}, {transform_indices = @transform_3, window_bounds = array<i64: 1, 3, 5>}, {transform_indices = @transform_4, window_bounds = array<i64: 1, 5, 3>}, {pipeline_mode = #tpu.pipeline_mode<synchronous>, transform_indices = @transform_5, window_bounds = array<i64: 8, 1152>}, {transform_indices = @transform_6, window_bounds = array<i64: 1, 1, 128>}]} {
    %c0 = arith.constant 0 : index
    %c0_0 = arith.constant 0 : index
    %c0_1 = arith.constant 0 : index
    %c0_2 = arith.constant 0 : index
    %0 = vector.load %arg2[%c0, %c0_0, %c0_1, %c0_2] : memref<1x1x8x5xf32, #tpu.memory_space<vmem>>, vector<1x1x8x5xf32>
    %1 = vector.shape_cast %0 : vector<1x1x8x5xf32> to vector<8x5xf32>
    %c0_3 = arith.constant 0 : index
    %c0_4 = arith.constant 0 : index
    %c0_5 = arith.constant 0 : index
    %c0_6 = arith.constant 0 : index
    %2 = vector.load %arg3[%c0_3, %c0_4, %c0_5, %c0_6] : memref<1x1x8x4xf32, #tpu.memory_space<vmem>>, vector<1x1x8x4xf32>
    %3 = vector.shape_cast %2 : vector<1x1x8x4xf32> to vector<8x4xf32>
    %c0_7 = arith.constant 0 : index
    %c0_8 = arith.constant 0 : index
    %c0_9 = arith.constant 0 : index
    %4 = vector.load %arg4[%c0_7, %c0_8, %c0_9] : memref<1x4x3xf32, #tpu.memory_space<vmem>>, vector<1x4x3xf32>
    %5 = vector.shape_cast %4 : vector<1x4x3xf32> to vector<4x3xf32>
    %c0_10 = arith.constant 0 : index
    %c0_11 = arith.constant 0 : index
    %c0_12 = arith.constant 0 : index
    %6 = vector.load %arg5[%c0_10, %c0_11, %c0_12] : memref<1x3x5xf32, #tpu.memory_space<vmem>>, vector<1x3x5xf32>
    %7 = vector.shape_cast %6 : vector<1x3x5xf32> to vector<3x5xf32>
    %c0_13 = arith.constant 0 : index
    %c0_14 = arith.constant 0 : index
    %c0_15 = arith.constant 0 : index
    %8 = vector.load %arg6[%c0_13, %c0_14, %c0_15] : memref<1x5x3xf32, #tpu.memory_space<vmem>>, vector<1x5x3xf32>
    %9 = vector.shape_cast %8 : vector<1x5x3xf32> to vector<5x3xf32>
    %10 = vector.extract_strided_slice %3 {offsets = [0, 0], sizes = [8, 1], strides = [1, 1]} : vector<8x4xf32> to vector<8x1xf32>
    %11 = vector.extract_strided_slice %3 {offsets = [0, 1], sizes = [8, 1], strides = [1, 1]} : vector<8x4xf32> to vector<8x1xf32>
    %12 = vector.extract_strided_slice %3 {offsets = [0, 2], sizes = [8, 1], strides = [1, 1]} : vector<8x4xf32> to vector<8x1xf32>
    %13 = vector.extract_strided_slice %3 {offsets = [0, 3], sizes = [8, 1], strides = [1, 1]} : vector<8x4xf32> to vector<8x1xf32>
    %cst = arith.constant 5.000000e-01 : f32
    %14 = vector.broadcast %cst : f32 to vector<8x1xf32>
    %15 = arith.mulf %14, %12 : vector<8x1xf32>
    %16 = arith.subf %10, %15 : vector<8x1xf32>
    %cst_16 = arith.constant 5.000000e-01 : f32
    %17 = vector.broadcast %cst_16 : f32 to vector<8x1xf32>
    %18 = arith.mulf %17, %13 : vector<8x1xf32>
    %19 = arith.subf %11, %18 : vector<8x1xf32>
    %cst_17 = arith.constant 5.000000e-01 : f32
    %20 = vector.broadcast %cst_17 : f32 to vector<8x1xf32>
    %21 = arith.mulf %20, %12 : vector<8x1xf32>
    %22 = arith.addf %10, %21 : vector<8x1xf32>
    %cst_18 = arith.constant 5.000000e-01 : f32
    %23 = vector.broadcast %cst_18 : f32 to vector<8x1xf32>
    %24 = arith.mulf %23, %13 : vector<8x1xf32>
    %25 = arith.addf %11, %24 : vector<8x1xf32>
    %26 = vector.extract_strided_slice %5 {offsets = [0, 0], sizes = [1, 3], strides = [1, 1]} : vector<4x3xf32> to vector<1x3xf32>
    %27 = vector.extract_strided_slice %5 {offsets = [1, 0], sizes = [1, 3], strides = [1, 1]} : vector<4x3xf32> to vector<1x3xf32>
    %28 = vector.extract_strided_slice %5 {offsets = [2, 0], sizes = [1, 3], strides = [1, 1]} : vector<4x3xf32> to vector<1x3xf32>
    %29 = vector.extract_strided_slice %5 {offsets = [3, 0], sizes = [1, 3], strides = [1, 1]} : vector<4x3xf32> to vector<1x3xf32>
    %cst_19 = arith.constant 5.000000e-01 : f32
    %30 = vector.broadcast %cst_19 : f32 to vector<1x3xf32>
    %31 = arith.mulf %30, %28 : vector<1x3xf32>
    %32 = arith.subf %26, %31 : vector<1x3xf32>
    %cst_20 = arith.constant 5.000000e-01 : f32
    %33 = vector.broadcast %cst_20 : f32 to vector<1x3xf32>
    %34 = arith.mulf %33, %29 : vector<1x3xf32>
    %35 = arith.subf %27, %34 : vector<1x3xf32>
    %cst_21 = arith.constant 5.000000e-01 : f32
    %36 = vector.broadcast %cst_21 : f32 to vector<1x3xf32>
    %37 = arith.mulf %36, %28 : vector<1x3xf32>
    %38 = arith.addf %26, %37 : vector<1x3xf32>
    %cst_22 = arith.constant 5.000000e-01 : f32
    %39 = vector.broadcast %cst_22 : f32 to vector<1x3xf32>
    %40 = arith.mulf %39, %29 : vector<1x3xf32>
    %41 = arith.addf %27, %40 : vector<1x3xf32>
    %42 = vector.broadcast %22 : vector<8x1xf32> to vector<8x3xf32>
    %43 = vector.broadcast %38 : vector<1x3xf32> to vector<8x3xf32>
    %44 = arith.minimumf %42, %43 : vector<8x3xf32>
    %45 = vector.broadcast %16 : vector<8x1xf32> to vector<8x3xf32>
    %46 = vector.broadcast %32 : vector<1x3xf32> to vector<8x3xf32>
    %47 = arith.maximumf %45, %46 : vector<8x3xf32>
    %48 = arith.subf %44, %47 : vector<8x3xf32>
    %cst_23 = arith.constant 0.000000e+00 : f32
    %49 = vector.broadcast %cst_23 : f32 to vector<8x3xf32>
    %50 = arith.maximumf %48, %49 : vector<8x3xf32>
    %51 = vector.broadcast %25 : vector<8x1xf32> to vector<8x3xf32>
    %52 = vector.broadcast %41 : vector<1x3xf32> to vector<8x3xf32>
    %53 = arith.minimumf %51, %52 : vector<8x3xf32>
    %54 = vector.broadcast %19 : vector<8x1xf32> to vector<8x3xf32>
    %55 = vector.broadcast %35 : vector<1x3xf32> to vector<8x3xf32>
    %56 = arith.maximumf %54, %55 : vector<8x3xf32>
    %57 = arith.subf %53, %56 : vector<8x3xf32>
    %cst_24 = arith.constant 0.000000e+00 : f32
    %58 = vector.broadcast %cst_24 : f32 to vector<8x3xf32>
    %59 = arith.maximumf %57, %58 : vector<8x3xf32>
    %60 = arith.mulf %50, %59 : vector<8x3xf32>
    %61 = arith.subf %22, %16 : vector<8x1xf32>
    %62 = arith.subf %25, %19 : vector<8x1xf32>
    %63 = arith.mulf %61, %62 : vector<8x1xf32>
    %64 = arith.subf %38, %32 : vector<1x3xf32>
    %65 = arith.subf %41, %35 : vector<1x3xf32>
    %66 = arith.mulf %64, %65 : vector<1x3xf32>
    %67 = vector.broadcast %63 : vector<8x1xf32> to vector<8x3xf32>
    %68 = vector.broadcast %66 : vector<1x3xf32> to vector<8x3xf32>
    %69 = arith.addf %67, %68 : vector<8x3xf32>
    %70 = arith.subf %69, %60 : vector<8x3xf32>
    %cst_25 = arith.constant 9.99999971E-10 : f32
    %71 = vector.broadcast %cst_25 : f32 to vector<8x3xf32>
    %72 = arith.addf %70, %71 : vector<8x3xf32>
    %73 = arith.divf %60, %72 : vector<8x3xf32>
    %74 = vector.broadcast %22 : vector<8x1xf32> to vector<8x3xf32>
    %75 = vector.broadcast %38 : vector<1x3xf32> to vector<8x3xf32>
    %76 = arith.maximumf %74, %75 : vector<8x3xf32>
    %77 = vector.broadcast %16 : vector<8x1xf32> to vector<8x3xf32>
    %78 = vector.broadcast %32 : vector<1x3xf32> to vector<8x3xf32>
    %79 = arith.minimumf %77, %78 : vector<8x3xf32>
    %80 = arith.subf %76, %79 : vector<8x3xf32>
    %81 = vector.broadcast %25 : vector<8x1xf32> to vector<8x3xf32>
    %82 = vector.broadcast %41 : vector<1x3xf32> to vector<8x3xf32>
    %83 = arith.maximumf %81, %82 : vector<8x3xf32>
    %84 = vector.broadcast %19 : vector<8x1xf32> to vector<8x3xf32>
    %85 = vector.broadcast %35 : vector<1x3xf32> to vector<8x3xf32>
    %86 = arith.minimumf %84, %85 : vector<8x3xf32>
    %87 = arith.subf %83, %86 : vector<8x3xf32>
    %88 = arith.mulf %80, %87 : vector<8x3xf32>
    %89 = arith.subf %88, %70 : vector<8x3xf32>
    %cst_26 = arith.constant 9.99999971E-10 : f32
    %90 = vector.broadcast %cst_26 : f32 to vector<8x3xf32>
    %91 = arith.addf %88, %90 : vector<8x3xf32>
    %92 = arith.divf %89, %91 : vector<8x3xf32>
    %93 = arith.subf %73, %92 : vector<8x3xf32>
    %cst_27 = arith.constant 0.000000e+00 : f32
    %94 = vector.broadcast %cst_27 : f32 to vector<8x5xf32>
    %95 = arith.subf %94, %1 : vector<8x5xf32>
    %96 = math.exp %95 : vector<8x5xf32>
    %cst_28 = arith.constant 1.000000e+00 : f32
    %97 = vector.broadcast %cst_28 : f32 to vector<8x5xf32>
    %98 = arith.addf %97, %96 : vector<8x5xf32>
    %cst_29 = arith.constant 1.000000e+00 : f32
    %99 = vector.broadcast %cst_29 : f32 to vector<8x5xf32>
    %100 = arith.divf %99, %98 : vector<8x5xf32>
    %101 = arith.mulf %100, %100 : vector<8x5xf32>
    %cst_30 = arith.constant 7.500000e-01 : f32
    %102 = vector.broadcast %cst_30 : f32 to vector<8x5xf32>
    %103 = arith.mulf %102, %101 : vector<8x5xf32>
    %cst_31 = arith.constant 1.000000e+00 : f32
    %104 = vector.broadcast %cst_31 : f32 to vector<8x5xf32>
    %105 = arith.subf %104, %100 : vector<8x5xf32>
    %cst_32 = arith.constant 9.99999993E-9 : f32
    %106 = vector.broadcast %cst_32 : f32 to vector<8x5xf32>
    %107 = arith.addf %105, %106 : vector<8x5xf32>
    %108 = math.log %107 : vector<8x5xf32>
    %cst_33 = arith.constant 0.000000e+00 : f32
    %109 = vector.broadcast %cst_33 : f32 to vector<8x5xf32>
    %110 = arith.subf %109, %108 : vector<8x5xf32>
    %111 = arith.mulf %103, %110 : vector<8x5xf32>
    %cst_34 = arith.constant 1.000000e+00 : f32
    %112 = vector.broadcast %cst_34 : f32 to vector<8x5xf32>
    %113 = arith.subf %112, %100 : vector<8x5xf32>
    %cst_35 = arith.constant 1.000000e+00 : f32
    %114 = vector.broadcast %cst_35 : f32 to vector<8x5xf32>
    %115 = arith.subf %114, %100 : vector<8x5xf32>
    %116 = arith.mulf %113, %115 : vector<8x5xf32>
    %cst_36 = arith.constant 2.500000e-01 : f32
    %117 = vector.broadcast %cst_36 : f32 to vector<8x5xf32>
    %118 = arith.mulf %117, %116 : vector<8x5xf32>
    %cst_37 = arith.constant 9.99999993E-9 : f32
    %119 = vector.broadcast %cst_37 : f32 to vector<8x5xf32>
    %120 = arith.addf %100, %119 : vector<8x5xf32>
    %121 = math.log %120 : vector<8x5xf32>
    %cst_38 = arith.constant 0.000000e+00 : f32
    %122 = vector.broadcast %cst_38 : f32 to vector<8x5xf32>
    %123 = arith.subf %122, %121 : vector<8x5xf32>
    %124 = arith.mulf %118, %123 : vector<8x5xf32>
    %125 = arith.subf %124, %111 : vector<8x5xf32>
    %cst_39 = arith.constant 0.000000e+00 : f32
    %126 = vector.broadcast %cst_39 : f32 to vector<8x3xf32>
    %127 = vector.extract_strided_slice %125 {offsets = [0, 0], sizes = [8, 1], strides = [1, 1]} : vector<8x5xf32> to vector<8x1xf32>
    %128 = vector.extract_strided_slice %9 {offsets = [0, 0], sizes = [1, 3], strides = [1, 1]} : vector<5x3xf32> to vector<1x3xf32>
    %129 = vector.broadcast %127 : vector<8x1xf32> to vector<8x3xf32>
    %130 = vector.broadcast %128 : vector<1x3xf32> to vector<8x3xf32>
    %131 = arith.mulf %129, %130 : vector<8x3xf32>
    %132 = arith.addf %126, %131 : vector<8x3xf32>
    %133 = vector.extract_strided_slice %125 {offsets = [0, 1], sizes = [8, 1], strides = [1, 1]} : vector<8x5xf32> to vector<8x1xf32>
    %134 = vector.extract_strided_slice %9 {offsets = [1, 0], sizes = [1, 3], strides = [1, 1]} : vector<5x3xf32> to vector<1x3xf32>
    %135 = vector.broadcast %133 : vector<8x1xf32> to vector<8x3xf32>
    %136 = vector.broadcast %134 : vector<1x3xf32> to vector<8x3xf32>
    %137 = arith.mulf %135, %136 : vector<8x3xf32>
    %138 = arith.addf %132, %137 : vector<8x3xf32>
    %139 = vector.extract_strided_slice %125 {offsets = [0, 2], sizes = [8, 1], strides = [1, 1]} : vector<8x5xf32> to vector<8x1xf32>
    %140 = vector.extract_strided_slice %9 {offsets = [2, 0], sizes = [1, 3], strides = [1, 1]} : vector<5x3xf32> to vector<1x3xf32>
    %141 = vector.broadcast %139 : vector<8x1xf32> to vector<8x3xf32>
    %142 = vector.broadcast %140 : vector<1x3xf32> to vector<8x3xf32>
    %143 = arith.mulf %141, %142 : vector<8x3xf32>
    %144 = arith.addf %138, %143 : vector<8x3xf32>
    %145 = vector.extract_strided_slice %125 {offsets = [0, 3], sizes = [8, 1], strides = [1, 1]} : vector<8x5xf32> to vector<8x1xf32>
    %146 = vector.extract_strided_slice %9 {offsets = [3, 0], sizes = [1, 3], strides = [1, 1]} : vector<5x3xf32> to vector<1x3xf32>
    %147 = vector.broadcast %145 : vector<8x1xf32> to vector<8x3xf32>
    %148 = vector.broadcast %146 : vector<1x3xf32> to vector<8x3xf32>
    %149 = arith.mulf %147, %148 : vector<8x3xf32>
    %150 = arith.addf %144, %149 : vector<8x3xf32>
    %151 = vector.extract_strided_slice %125 {offsets = [0, 4], sizes = [8, 1], strides = [1, 1]} : vector<8x5xf32> to vector<8x1xf32>
    %152 = vector.extract_strided_slice %9 {offsets = [4, 0], sizes = [1, 3], strides = [1, 1]} : vector<5x3xf32> to vector<1x3xf32>
    %153 = vector.broadcast %151 : vector<8x1xf32> to vector<8x3xf32>
    %154 = vector.broadcast %152 : vector<1x3xf32> to vector<8x3xf32>
    %155 = arith.mulf %153, %154 : vector<8x3xf32>
    %156 = arith.addf %150, %155 : vector<8x3xf32>
    %cst_40 = arith.constant 0.000000e+00 : f32
    %157 = vector.broadcast %cst_40 : f32 to vector<8x3xf32>
    %158 = vector.extract_strided_slice %3 {offsets = [0, 0], sizes = [8, 1], strides = [1, 1]} : vector<8x4xf32> to vector<8x1xf32>
    %159 = vector.extract_strided_slice %5 {offsets = [0, 0], sizes = [1, 3], strides = [1, 1]} : vector<4x3xf32> to vector<1x3xf32>
    %160 = vector.broadcast %158 : vector<8x1xf32> to vector<8x3xf32>
    %161 = vector.broadcast %159 : vector<1x3xf32> to vector<8x3xf32>
    %162 = arith.subf %160, %161 : vector<8x3xf32>
    %163 = math.absf %162 : vector<8x3xf32>
    %164 = arith.addf %157, %163 : vector<8x3xf32>
    %165 = vector.extract_strided_slice %3 {offsets = [0, 1], sizes = [8, 1], strides = [1, 1]} : vector<8x4xf32> to vector<8x1xf32>
    %166 = vector.extract_strided_slice %5 {offsets = [1, 0], sizes = [1, 3], strides = [1, 1]} : vector<4x3xf32> to vector<1x3xf32>
    %167 = vector.broadcast %165 : vector<8x1xf32> to vector<8x3xf32>
    %168 = vector.broadcast %166 : vector<1x3xf32> to vector<8x3xf32>
    %169 = arith.subf %167, %168 : vector<8x3xf32>
    %170 = math.absf %169 : vector<8x3xf32>
    %171 = arith.addf %164, %170 : vector<8x3xf32>
    %172 = vector.extract_strided_slice %3 {offsets = [0, 2], sizes = [8, 1], strides = [1, 1]} : vector<8x4xf32> to vector<8x1xf32>
    %173 = vector.extract_strided_slice %5 {offsets = [2, 0], sizes = [1, 3], strides = [1, 1]} : vector<4x3xf32> to vector<1x3xf32>
    %174 = vector.broadcast %172 : vector<8x1xf32> to vector<8x3xf32>
    %175 = vector.broadcast %173 : vector<1x3xf32> to vector<8x3xf32>
    %176 = arith.subf %174, %175 : vector<8x3xf32>
    %177 = math.absf %176 : vector<8x3xf32>
    %178 = arith.addf %171, %177 : vector<8x3xf32>
    %179 = vector.extract_strided_slice %3 {offsets = [0, 3], sizes = [8, 1], strides = [1, 1]} : vector<8x4xf32> to vector<8x1xf32>
    %180 = vector.extract_strided_slice %5 {offsets = [3, 0], sizes = [1, 3], strides = [1, 1]} : vector<4x3xf32> to vector<1x3xf32>
    %181 = vector.broadcast %179 : vector<8x1xf32> to vector<8x3xf32>
    %182 = vector.broadcast %180 : vector<1x3xf32> to vector<8x3xf32>
    %183 = arith.subf %181, %182 : vector<8x3xf32>
    %184 = math.absf %183 : vector<8x3xf32>
    %185 = arith.addf %178, %184 : vector<8x3xf32>
    %cst_41 = arith.constant 5.000000e+00 : f32
    %186 = vector.broadcast %cst_41 : f32 to vector<8x3xf32>
    %187 = arith.mulf %186, %185 : vector<8x3xf32>
    %cst_42 = arith.constant 2.000000e+00 : f32
    %188 = vector.broadcast %cst_42 : f32 to vector<8x3xf32>
    %189 = arith.mulf %188, %156 : vector<8x3xf32>
    %190 = arith.addf %187, %189 : vector<8x3xf32>
    %cst_43 = arith.constant 2.000000e+00 : f32
    %191 = vector.broadcast %cst_43 : f32 to vector<8x3xf32>
    %192 = arith.mulf %191, %93 : vector<8x3xf32>
    %193 = arith.subf %190, %192 : vector<8x3xf32>
    %c0_44 = arith.constant 0 : index
    %c0_45 = arith.constant 0 : index
    %194 = vector.load %arg7[%c0_44, %c0_45] : memref<8x1152xf32, #tpu.memory_space<vmem>>, vector<8x384xf32>
    %195 = vector.extract_strided_slice %193 {offsets = [0, 0], sizes = [8, 1], strides = [1, 1]} : vector<8x3xf32> to vector<8x1xf32>
    %196 = vector.broadcast %195 : vector<8x1xf32> to vector<8x384xf32>
    %197 = arith.mulf %194, %196 : vector<8x384xf32>
    %c0_46 = arith.constant 0 : index
    %c384 = arith.constant 384 : index
    %198 = vector.load %arg7[%c0_46, %c384] : memref<8x1152xf32, #tpu.memory_space<vmem>>, vector<8x384xf32>
    %199 = vector.extract_strided_slice %193 {offsets = [0, 1], sizes = [8, 1], strides = [1, 1]} : vector<8x3xf32> to vector<8x1xf32>
    %200 = vector.broadcast %199 : vector<8x1xf32> to vector<8x384xf32>
    %201 = arith.mulf %198, %200 : vector<8x384xf32>
    %c0_47 = arith.constant 0 : index
    %c768 = arith.constant 768 : index
    %202 = vector.load %arg7[%c0_47, %c768] : memref<8x1152xf32, #tpu.memory_space<vmem>>, vector<8x384xf32>
    %203 = vector.extract_strided_slice %193 {offsets = [0, 2], sizes = [8, 1], strides = [1, 1]} : vector<8x3xf32> to vector<8x1xf32>
    %204 = vector.broadcast %203 : vector<8x1xf32> to vector<8x384xf32>
    %205 = arith.mulf %202, %204 : vector<8x384xf32>
    %206 = tpu.concatenate %197, %201, %205 in 1 : vector<8x384xf32>, vector<8x384xf32>, vector<8x384xf32> -> vector<8x1152xf32>
    %cst_48 = arith.constant dense<0.000000e+00> : vector<1152xf32>
    %207 = vector.multi_reduction <add>, %206, %cst_48 [0] : vector<8x1152xf32> to vector<1152xf32>
    %208 = vector.shape_cast %207 : vector<1152xf32> to vector<1x1152xf32>
    %209 = vector.extract_strided_slice %208 {offsets = [0, 0], sizes = [1, 384], strides = [1, 1]} : vector<1x1152xf32> to vector<1x384xf32>
    %210 = vector.extract_strided_slice %208 {offsets = [0, 384], sizes = [1, 384], strides = [1, 1]} : vector<1x1152xf32> to vector<1x384xf32>
    %211 = arith.addf %209, %210 : vector<1x384xf32>
    %212 = vector.extract_strided_slice %208 {offsets = [0, 768], sizes = [1, 384], strides = [1, 1]} : vector<1x1152xf32> to vector<1x384xf32>
    %213 = arith.addf %211, %212 : vector<1x384xf32>
    %214 = tpu.iota {dimensions = array<i32: 1>} : vector<1x384xi32>
    %215 = arith.sitofp %214 : vector<1x384xi32> to vector<1x384xf32>
    %cst_49 = arith.constant 3.360000e+02 : f32
    %216 = vector.broadcast %cst_49 : f32 to vector<1x384xf32>
    %217 = arith.cmpf oge, %215, %216 : vector<1x384xf32>
    %cst_50 = arith.constant 1.000000e+30 : f32
    %cst_51 = arith.constant 0.000000e+00 : f32
    %218 = vector.broadcast %cst_50 : f32 to vector<1x384xf32>
    %219 = vector.broadcast %cst_51 : f32 to vector<1x384xf32>
    %220 = arith.select %217, %218, %219 : vector<1x384xi1>, vector<1x384xf32>
    %221 = arith.addf %213, %220 : vector<1x384xf32>
    %cst_52 = arith.constant dense<0x7F800000> : vector<1xf32>
    %222 = vector.multi_reduction <minimumf>, %221, %cst_52 [1] : vector<1x384xf32> to vector<1xf32>
    %223 = vector.shape_cast %222 : vector<1xf32> to vector<1x1xf32>
    %224 = vector.broadcast %223 : vector<1x1xf32> to vector<1x384xf32>
    %225 = arith.cmpf ole, %221, %224 : vector<1x384xf32>
    %cst_53 = arith.constant 3.840000e+02 : f32
    %226 = vector.broadcast %cst_53 : f32 to vector<1x384xf32>
    %227 = arith.select %225, %215, %226 : vector<1x384xi1>, vector<1x384xf32>
    %cst_54 = arith.constant dense<0x7F800000> : vector<1xf32>
    %228 = vector.multi_reduction <minimumf>, %227, %cst_54 [1] : vector<1x384xf32> to vector<1xf32>
    %229 = vector.shape_cast %228 : vector<1xf32> to vector<1x1xf32>
    %230 = vector.broadcast %229 : vector<1x1xf32> to vector<1x384xf32>
    %231 = arith.cmpf oeq, %215, %230 : vector<1x384xf32>
    %232 = arith.extui %231 : vector<1x384xi1> to vector<1x384xi32>
    %233 = arith.sitofp %232 : vector<1x384xi32> to vector<1x384xf32>
    %cst_55 = arith.constant 1.000000e+00 : f32
    %234 = vector.broadcast %cst_55 : f32 to vector<1x384xf32>
    %235 = arith.mulf %233, %234 : vector<1x384xf32>
    %cst_56 = arith.constant 2.000000e+00 : f32
    %236 = vector.broadcast %cst_56 : f32 to vector<1x384xf32>
    %237 = arith.mulf %233, %236 : vector<1x384xf32>
    %cst_57 = arith.constant 3.000000e+00 : f32
    %238 = vector.broadcast %cst_57 : f32 to vector<1x384xf32>
    %239 = arith.mulf %233, %238 : vector<1x384xf32>
    %240 = tpu.concatenate %235, %237, %239 in 1 : vector<1x384xf32>, vector<1x384xf32>, vector<1x384xf32> -> vector<1x1152xf32>
    %c0_58 = arith.constant 0 : index
    %c0_59 = arith.constant 0 : index
    %241 = vector.load %arg7[%c0_58, %c0_59] : memref<8x1152xf32, #tpu.memory_space<vmem>>, vector<8x1152xf32>
    %242 = vector.broadcast %240 : vector<1x1152xf32> to vector<8x1152xf32>
    %243 = arith.mulf %241, %242 : vector<8x1152xf32>
    %cst_60 = arith.constant dense<0.000000e+00> : vector<8xf32>
    %244 = vector.multi_reduction <add>, %243, %cst_60 [1] : vector<8x1152xf32> to vector<8xf32>
    %245 = vector.shape_cast %244 : vector<8xf32> to vector<8x1xf32>
    %cst_61 = arith.constant 0.000000e+00 : f32
    %246 = vector.broadcast %cst_61 : f32 to vector<8x1xf32>
    %cst_62 = arith.constant 0.000000e+00 : f32
    %247 = vector.broadcast %cst_62 : f32 to vector<8x1xf32>
    %cst_63 = arith.constant 0.000000e+00 : f32
    %248 = vector.broadcast %cst_63 : f32 to vector<8x1xf32>
    %cst_64 = arith.constant 0.000000e+00 : f32
    %249 = vector.broadcast %cst_64 : f32 to vector<8x5xf32>
    %cst_65 = arith.constant 1.000000e+00 : f32
    %250 = vector.broadcast %cst_65 : f32 to vector<8x1xf32>
    %251 = arith.cmpf oeq, %245, %250 : vector<8x1xf32>
    %252 = arith.extui %251 : vector<8x1xi1> to vector<8x1xi32>
    %253 = arith.sitofp %252 : vector<8x1xi32> to vector<8x1xf32>
    %254 = vector.extract_strided_slice %73 {offsets = [0, 0], sizes = [8, 1], strides = [1, 1]} : vector<8x3xf32> to vector<8x1xf32>
    %255 = arith.mulf %253, %254 : vector<8x1xf32>
    %256 = arith.addf %246, %255 : vector<8x1xf32>
    %257 = vector.extract_strided_slice %185 {offsets = [0, 0], sizes = [8, 1], strides = [1, 1]} : vector<8x3xf32> to vector<8x1xf32>
    %258 = arith.mulf %253, %257 : vector<8x1xf32>
    %259 = arith.addf %247, %258 : vector<8x1xf32>
    %260 = vector.extract_strided_slice %93 {offsets = [0, 0], sizes = [8, 1], strides = [1, 1]} : vector<8x3xf32> to vector<8x1xf32>
    %261 = arith.mulf %253, %260 : vector<8x1xf32>
    %262 = arith.addf %248, %261 : vector<8x1xf32>
    %263 = vector.extract_strided_slice %7 {offsets = [0, 0], sizes = [1, 5], strides = [1, 1]} : vector<3x5xf32> to vector<1x5xf32>
    %264 = vector.broadcast %253 : vector<8x1xf32> to vector<8x5xf32>
    %265 = vector.broadcast %263 : vector<1x5xf32> to vector<8x5xf32>
    %266 = arith.mulf %264, %265 : vector<8x5xf32>
    %267 = arith.addf %249, %266 : vector<8x5xf32>
    %cst_66 = arith.constant 2.000000e+00 : f32
    %268 = vector.broadcast %cst_66 : f32 to vector<8x1xf32>
    %269 = arith.cmpf oeq, %245, %268 : vector<8x1xf32>
    %270 = arith.extui %269 : vector<8x1xi1> to vector<8x1xi32>
    %271 = arith.sitofp %270 : vector<8x1xi32> to vector<8x1xf32>
    %272 = vector.extract_strided_slice %73 {offsets = [0, 1], sizes = [8, 1], strides = [1, 1]} : vector<8x3xf32> to vector<8x1xf32>
    %273 = arith.mulf %271, %272 : vector<8x1xf32>
    %274 = arith.addf %256, %273 : vector<8x1xf32>
    %275 = vector.extract_strided_slice %185 {offsets = [0, 1], sizes = [8, 1], strides = [1, 1]} : vector<8x3xf32> to vector<8x1xf32>
    %276 = arith.mulf %271, %275 : vector<8x1xf32>
    %277 = arith.addf %259, %276 : vector<8x1xf32>
    %278 = vector.extract_strided_slice %93 {offsets = [0, 1], sizes = [8, 1], strides = [1, 1]} : vector<8x3xf32> to vector<8x1xf32>
    %279 = arith.mulf %271, %278 : vector<8x1xf32>
    %280 = arith.addf %262, %279 : vector<8x1xf32>
    %281 = vector.extract_strided_slice %7 {offsets = [1, 0], sizes = [1, 5], strides = [1, 1]} : vector<3x5xf32> to vector<1x5xf32>
    %282 = vector.broadcast %271 : vector<8x1xf32> to vector<8x5xf32>
    %283 = vector.broadcast %281 : vector<1x5xf32> to vector<8x5xf32>
    %284 = arith.mulf %282, %283 : vector<8x5xf32>
    %285 = arith.addf %267, %284 : vector<8x5xf32>
    %cst_67 = arith.constant 3.000000e+00 : f32
    %286 = vector.broadcast %cst_67 : f32 to vector<8x1xf32>
    %287 = arith.cmpf oeq, %245, %286 : vector<8x1xf32>
    %288 = arith.extui %287 : vector<8x1xi1> to vector<8x1xi32>
    %289 = arith.sitofp %288 : vector<8x1xi32> to vector<8x1xf32>
    %290 = vector.extract_strided_slice %73 {offsets = [0, 2], sizes = [8, 1], strides = [1, 1]} : vector<8x3xf32> to vector<8x1xf32>
    %291 = arith.mulf %289, %290 : vector<8x1xf32>
    %292 = arith.addf %274, %291 : vector<8x1xf32>
    %293 = vector.extract_strided_slice %185 {offsets = [0, 2], sizes = [8, 1], strides = [1, 1]} : vector<8x3xf32> to vector<8x1xf32>
    %294 = arith.mulf %289, %293 : vector<8x1xf32>
    %295 = arith.addf %277, %294 : vector<8x1xf32>
    %296 = vector.extract_strided_slice %93 {offsets = [0, 2], sizes = [8, 1], strides = [1, 1]} : vector<8x3xf32> to vector<8x1xf32>
    %297 = arith.mulf %289, %296 : vector<8x1xf32>
    %298 = arith.addf %280, %297 : vector<8x1xf32>
    %299 = vector.extract_strided_slice %7 {offsets = [2, 0], sizes = [1, 5], strides = [1, 1]} : vector<3x5xf32> to vector<1x5xf32>
    %300 = vector.broadcast %289 : vector<8x1xf32> to vector<8x5xf32>
    %301 = vector.broadcast %299 : vector<1x5xf32> to vector<8x5xf32>
    %302 = arith.mulf %300, %301 : vector<8x5xf32>
    %303 = arith.addf %285, %302 : vector<8x5xf32>
    %cst_68 = arith.constant dense<0.000000e+00> : vector<8xf32>
    %304 = vector.multi_reduction <add>, %295, %cst_68 [1] : vector<8x1xf32> to vector<8xf32>
    %305 = vector.shape_cast %304 : vector<8xf32> to vector<8x1xf32>
    %cst_69 = arith.constant dense<0.000000e+00> : vector<1xf32>
    %306 = vector.multi_reduction <add>, %305, %cst_69 [0] : vector<8x1xf32> to vector<1xf32>
    %307 = vector.shape_cast %306 : vector<1xf32> to vector<1x1xf32>
    %cst_70 = arith.constant dense<0.000000e+00> : vector<8xf32>
    %308 = vector.multi_reduction <add>, %298, %cst_70 [1] : vector<8x1xf32> to vector<8xf32>
    %309 = vector.shape_cast %308 : vector<8xf32> to vector<8x1xf32>
    %cst_71 = arith.constant dense<0.000000e+00> : vector<1xf32>
    %310 = vector.multi_reduction <add>, %309, %cst_71 [0] : vector<8x1xf32> to vector<1xf32>
    %311 = vector.shape_cast %310 : vector<1xf32> to vector<1x1xf32>
    %cst_72 = arith.constant 3.000000e+00 : f32
    %312 = vector.broadcast %cst_72 : f32 to vector<1x1xf32>
    %313 = arith.subf %312, %311 : vector<1x1xf32>
    %cst_73 = arith.constant 0.000000e+00 : f32
    %314 = vector.broadcast %cst_73 : f32 to vector<8x5xf32>
    %315 = arith.subf %314, %1 : vector<8x5xf32>
    %316 = math.exp %315 : vector<8x5xf32>
    %cst_74 = arith.constant 1.000000e+00 : f32
    %317 = vector.broadcast %cst_74 : f32 to vector<8x5xf32>
    %318 = arith.addf %317, %316 : vector<8x5xf32>
    %cst_75 = arith.constant 1.000000e+00 : f32
    %319 = vector.broadcast %cst_75 : f32 to vector<8x5xf32>
    %320 = arith.divf %319, %318 : vector<8x5xf32>
    %321 = vector.broadcast %292 : vector<8x1xf32> to vector<8x5xf32>
    %322 = arith.mulf %321, %303 : vector<8x5xf32>
    %323 = arith.mulf %320, %320 : vector<8x5xf32>
    %cst_76 = arith.constant 7.500000e-01 : f32
    %324 = vector.broadcast %cst_76 : f32 to vector<8x5xf32>
    %325 = arith.mulf %324, %323 : vector<8x5xf32>
    %cst_77 = arith.constant 1.000000e+00 : f32
    %326 = vector.broadcast %cst_77 : f32 to vector<8x5xf32>
    %327 = arith.subf %326, %303 : vector<8x5xf32>
    %328 = arith.mulf %325, %327 : vector<8x5xf32>
    %329 = arith.addf %328, %322 : vector<8x5xf32>
    %cst_78 = arith.constant 0.000000e+00 : f32
    %330 = vector.broadcast %cst_78 : f32 to vector<8x5xf32>
    %331 = arith.maximumf %1, %330 : vector<8x5xf32>
    %332 = arith.mulf %1, %322 : vector<8x5xf32>
    %333 = arith.subf %331, %332 : vector<8x5xf32>
    %334 = math.absf %1 : vector<8x5xf32>
    %cst_79 = arith.constant 0.000000e+00 : f32
    %335 = vector.broadcast %cst_79 : f32 to vector<8x5xf32>
    %336 = arith.subf %335, %334 : vector<8x5xf32>
    %337 = math.exp %336 : vector<8x5xf32>
    %cst_80 = arith.constant 1.000000e+00 : f32
    %338 = vector.broadcast %cst_80 : f32 to vector<8x5xf32>
    %339 = arith.addf %338, %337 : vector<8x5xf32>
    %340 = math.log %339 : vector<8x5xf32>
    %341 = arith.addf %333, %340 : vector<8x5xf32>
    %342 = arith.mulf %329, %341 : vector<8x5xf32>
    %cst_81 = arith.constant dense<0.000000e+00> : vector<8xf32>
    %343 = vector.multi_reduction <add>, %342, %cst_81 [1] : vector<8x5xf32> to vector<8xf32>
    %344 = vector.shape_cast %343 : vector<8xf32> to vector<8x1xf32>
    %cst_82 = arith.constant dense<0.000000e+00> : vector<1xf32>
    %345 = vector.multi_reduction <add>, %344, %cst_82 [0] : vector<8x1xf32> to vector<1xf32>
    %346 = vector.shape_cast %345 : vector<1xf32> to vector<1x1xf32>
    %347 = vector.extract_strided_slice %1 {offsets = [0, 0], sizes = [8, 4], strides = [1, 1]} : vector<8x5xf32> to vector<8x4xf32>
    %cst_83 = arith.constant dense<0xFF800000> : vector<8xf32>
    %348 = vector.multi_reduction <maximumf>, %347, %cst_83 [1] : vector<8x4xf32> to vector<8xf32>
    %349 = vector.shape_cast %348 : vector<8xf32> to vector<8x1xf32>
    %350 = vector.extract_strided_slice %1 {offsets = [0, 4], sizes = [8, 1], strides = [1, 1]} : vector<8x5xf32> to vector<8x1xf32>
    %351 = arith.cmpf oge, %349, %350 : vector<8x1xf32>
    %352 = arith.extui %351 : vector<8x1xi1> to vector<8x1xi32>
    %353 = arith.sitofp %352 : vector<8x1xi32> to vector<8x1xf32>
    %cst_84 = arith.constant dense<0.000000e+00> : vector<8xf32>
    %354 = vector.multi_reduction <add>, %353, %cst_84 [1] : vector<8x1xf32> to vector<8xf32>
    %355 = vector.shape_cast %354 : vector<8xf32> to vector<8x1xf32>
    %cst_85 = arith.constant dense<0.000000e+00> : vector<1xf32>
    %356 = vector.multi_reduction <add>, %355, %cst_85 [0] : vector<8x1xf32> to vector<1xf32>
    %357 = vector.shape_cast %356 : vector<1xf32> to vector<1x1xf32>
    %cst_86 = arith.constant 3.000000e+00 : f32
    %358 = vector.broadcast %cst_86 : f32 to vector<1x1xf32>
    %359 = arith.subf %357, %358 : vector<1x1xf32>
    %360 = math.absf %359 : vector<1x1xf32>
    %361 = tpu.iota {dimensions = array<i32: 1>} : vector<1x128xi32>
    %c0_i32 = arith.constant 0 : i32
    %362 = vector.broadcast %c0_i32 : i32 to vector<1x128xi32>
    %363 = arith.cmpi eq, %361, %362 : vector<1x128xi32>
    %c1_i32 = arith.constant 1 : i32
    %364 = vector.broadcast %c1_i32 : i32 to vector<1x128xi32>
    %365 = arith.cmpi eq, %361, %364 : vector<1x128xi32>
    %c2_i32 = arith.constant 2 : i32
    %366 = vector.broadcast %c2_i32 : i32 to vector<1x128xi32>
    %367 = arith.cmpi eq, %361, %366 : vector<1x128xi32>
    %c3_i32 = arith.constant 3 : i32
    %368 = vector.broadcast %c3_i32 : i32 to vector<1x128xi32>
    %369 = arith.cmpi eq, %361, %368 : vector<1x128xi32>
    %cst_87 = arith.constant 0.000000e+00 : f32
    %370 = vector.shape_cast %360 : vector<1x1xf32> to vector<1x1xf32>
    %371 = vector.broadcast %370 : vector<1x1xf32> to vector<1x128xf32>
    %372 = vector.broadcast %cst_87 : f32 to vector<1x128xf32>
    %373 = arith.select %369, %371, %372 : vector<1x128xi1>, vector<1x128xf32>
    %374 = vector.shape_cast %313 : vector<1x1xf32> to vector<1x1xf32>
    %375 = vector.broadcast %374 : vector<1x1xf32> to vector<1x128xf32>
    %376 = arith.select %367, %375, %373 : vector<1x128xi1>, vector<1x128xf32>
    %377 = vector.shape_cast %307 : vector<1x1xf32> to vector<1x1xf32>
    %378 = vector.broadcast %377 : vector<1x1xf32> to vector<1x128xf32>
    %379 = arith.select %365, %378, %376 : vector<1x128xi1>, vector<1x128xf32>
    %380 = vector.shape_cast %346 : vector<1x1xf32> to vector<1x1xf32>
    %381 = vector.broadcast %380 : vector<1x1xf32> to vector<1x128xf32>
    %382 = arith.select %363, %381, %379 : vector<1x128xi1>, vector<1x128xf32>
    %c0_i32_88 = arith.constant 0 : i32
    %383 = arith.cmpi eq, %arg1, %c0_i32_88 : i32
    %384 = arith.extui %383 : i1 to i32
    %c0_i32_89 = arith.constant 0 : i32
    %385 = arith.cmpi ne, %384, %c0_i32_89 : i32
    scf.if %385 {
      %cst_96 = arith.constant 0.000000e+00 : f32
      %392 = vector.broadcast %cst_96 : f32 to vector<1x1x128xf32>
      %c0_97 = arith.constant 0 : index
      %c0_98 = arith.constant 0 : index
      %c0_99 = arith.constant 0 : index
      %393 = vector.load %arg8[%c0_97, %c0_98, %c0_99] : memref<1x1x128xf32, #tpu.memory_space<vmem>>, vector<1x1x128xf32>
      tpu.vector_store %arg8[%c0_97, %c0_98, %c0_99], %392 {strides = array<i32>} : memref<1x1x128xf32, #tpu.memory_space<vmem>>, vector<1x1x128xf32>,
    } else {
    }
    %c0_90 = arith.constant 0 : index
    %c0_91 = arith.constant 0 : index
    %c0_92 = arith.constant 0 : index
    %386 = vector.load %arg8[%c0_90, %c0_91, %c0_92] : memref<1x1x128xf32, #tpu.memory_space<vmem>>, vector<1x1x128xf32>
    %387 = vector.shape_cast %386 : vector<1x1x128xf32> to vector<1x128xf32>
    %388 = arith.addf %387, %382 : vector<1x128xf32>
    %c0_93 = arith.constant 0 : index
    %c0_94 = arith.constant 0 : index
    %c0_95 = arith.constant 0 : index
    %389 = vector.load %arg8[%c0_93, %c0_94, %c0_95] : memref<1x1x128xf32, #tpu.memory_space<vmem>>, vector<1x1x128xf32>
    %390 = vector.shape_cast %389 : vector<1x1x128xf32> to vector<1x128xf32>
    %391 = vector.shape_cast %388 : vector<1x128xf32> to vector<1x1x128xf32>
    tpu.vector_store %arg8[%c0_93, %c0_94, %c0_95], %391 {strides = array<i32>} : memref<1x1x128xf32, #tpu.memory_space<vmem>>, vector<1x1x128xf32>,
    return
  }
  func.func @transform_0(%arg0: i32, %arg1: i32) -> (i32, i32, i32, i32) {
    %c0_i32 = arith.constant 0 : i32
    %c0_i32_0 = arith.constant 0 : i32
    %c0_i32_1 = arith.constant 0 : i32
    return %arg0, %arg1, %c0_i32, %c0_i32_0 : i32, i32, i32, i32
  }
  func.func @transform_1(%arg0: i32, %arg1: i32) -> (i32, i32, i32, i32) {
    %c0_i32 = arith.constant 0 : i32
    %c0_i32_0 = arith.constant 0 : i32
    %c0_i32_1 = arith.constant 0 : i32
    return %arg0, %arg1, %c0_i32, %c0_i32_0 : i32, i32, i32, i32
  }
  func.func @transform_2(%arg0: i32, %arg1: i32) -> (i32, i32, i32) {
    %c0_i32 = arith.constant 0 : i32
    %c0_i32_0 = arith.constant 0 : i32
    %c0_i32_1 = arith.constant 0 : i32
    return %arg1, %c0_i32, %c0_i32_0 : i32, i32, i32
  }
  func.func @transform_3(%arg0: i32, %arg1: i32) -> (i32, i32, i32) {
    %c0_i32 = arith.constant 0 : i32
    %c0_i32_0 = arith.constant 0 : i32
    %c0_i32_1 = arith.constant 0 : i32
    return %arg1, %c0_i32, %c0_i32_0 : i32, i32, i32
  }
  func.func @transform_4(%arg0: i32, %arg1: i32) -> (i32, i32, i32) {
    %c0_i32 = arith.constant 0 : i32
    %c0_i32_0 = arith.constant 0 : i32
    %c0_i32_1 = arith.constant 0 : i32
    return %arg1, %c0_i32, %c0_i32_0 : i32, i32, i32
  }
  func.func @transform_5(%arg0: i32, %arg1: i32) -> (i32, i32) {
    %c0_i32 = arith.constant 0 : i32
    %c0_i32_0 = arith.constant 0 : i32
    %c0_i32_1 = arith.constant 0 : i32
    return %c0_i32, %c0_i32_0 : i32, i32
  }
  func.func @transform_6(%arg0: i32, %arg1: i32) -> (i32, i32, i32) {
    %c0_i32 = arith.constant 0 : i32
    %c0_i32_0 = arith.constant 0 : i32
    %c0_i32_1 = arith.constant 0 : i32
    return %arg0, %c0_i32, %c0_i32_0 : i32, i32, i32
  }
}

</mosaic_0001>

<llo_original>
// kernel: set_criterion_forward.1
$region0: #{set_criterion_forward.1}
  #allocation0 [shape = 'u32[]', space=smem, size = 0x4, offset = 0x4, fixed_abs, tag = 'smem constant byte address 0x4 - core index']
  #allocation1 [shape = 'u32[144,128]{1,0:T(1,128)}', space=vmem, size = 0x12000, scoped, tag = 'internal scratch']
  %s0 = inlined_call_operand.vmem [shape: f32[3,2,8,5], index: 0, kind: input, shape index: {}]
  %s1 = inlined_call_operand.vmem [shape: f32[3,2,8,4], index: 1, kind: input, shape index: {}]
  %s2 = inlined_call_operand.vmem [shape: f32[2,4,3], index: 2, kind: input, shape index: {}]
  %s3 = inlined_call_operand.vmem [shape: f32[2,3,5], index: 3, kind: input, shape index: {}]
  %s4 = inlined_call_operand.vmem [shape: f32[2,5,3], index: 4, kind: input, shape index: {}]
  %s5 = inlined_call_operand.vmem [shape: f32[8,1152], index: 5, kind: input, shape index: {}]
  %s6 = inlined_call_operand.vmem [shape: f32[3,1,128], index: 6, kind: output, shape index: {}]
  %s7 = sld [smem:[#allocation0]]
  $region61: #{set_criterion_forward.1} parent=0
    _
  %s9 = ssub.s32 1, %s7
  %s10 = scalar_select 0, %s9, %s7
  loop: start=0, step=1, limit=8
  $region2: #{set_criterion_forward.1} parent=0 // loop_pre_header
    _
  $region3: #{set_criterion_forward.1} parent=0 // loop_header
    %s12 = sphi 0, %s16
    %p13 = scmp.ge.s32.totalorder %s12, 8
    %s19 = sphi 0, %s31
    %s20 = sphi 0, %s27
    %s21 = sphi 0, %s19
    %s22 = sphi 0, %s20
    %s23 = sphi 0, %s21
    %s24 = sphi 0, %s22
    %s36 = sphi 0, %s38
    %s39 = sphi 0, %s36
    %s40 = sphi 0, %s39
    %s56 = sphi 0, %s40
    %s64 = sphi 0, %s66
    %s67 = sphi 0, %s64
    %s68 = sphi 0, %s67
    %s84 = sphi 0, %s68
    %s90 = sphi 0, %s92
    %s93 = sphi 0, %s90
    %s94 = sphi 0, %s93
    %s110 = sphi 0, %s94
    %s116 = sphi 0, %s118
    %s119 = sphi 0, %s116
    %s120 = sphi 0, %s119
    %s136 = sphi 0, %s120
    %s142 = sphi 0, %s144
    %s145 = sphi 0, %s142
    %s146 = sphi 0, %s145
    %s162 = sphi 0, %s146
    %s166 = sphi 0, %s166
    %s168 = sphi 0, %s166
    %s169 = sphi 0, %s168
    %s183 = sphi 0, %s169
    %s189 = sphi 0, %s191
    %s192 = sphi 0, %s189
    %s193 = sphi 0, %s192
    %s209 = sphi 0, %s193
  $region4: #{set_criterion_forward.1} parent=0 // loop_header_branch
    %15 = sbr.rel (%p13) target = $region8
  $region5: #{set_criterion_forward.1} parent=0 // loop_body
    %s17 = ssub.s32 %s12, 1
    %s18 = ssub.s32 %s12, 2
    %s25 = sadd.s32 1, %s20
    %p26 = scmp.ge.s32.totalorder %s25, 2
    %s27 = scalar_select %p26, 0, %s25
    %s28 = sadd.s32 1, %s19
    %s29 = scalar_select %p26, %s28, %s19
    %p30 = scmp.ge.s32.totalorder %s29, 3
    %s31 = scalar_select %p30, 0, %s29
    %s32 = ssub.s32 %s19, %s31
    %s33 = ssub.s32 %s20, %s27
    %s34 = sor.u32 %s32, %s33
    %p35 = scmp.eq.s32.totalorder %s34, 0
    %s37 = sadd.s32 %s36, 1
    %s38 = scalar_select %p35, %s36, %s37
    %p41 = pneg %p35
    %p42 = scmp.eq.s32.totalorder %s12, 5
    %p43 = por %p41, %p42
    %p44 = scmp.ne.s32.totalorder %s36, %s39
    %p45 = scmp.eq.s32.totalorder %s12, 0
    %p46 = por %p44, %p45
    %p47 = scmp.ne.s32.totalorder %s36, %s39
    %p48 = scmp.eq.s32.totalorder %s17, 5
    %p49 = por %p47, %p48
    %p50 = scmp.ne.s32.totalorder %s39, %s40
    %p51 = scmp.eq.s32.totalorder %s17, 0
    %p52 = por %p50, %p51
    %p53 = scmp.ne.s32.totalorder %s39, %s40
    %p54 = scmp.eq.s32.totalorder %s18, 5
    %p55 = por %p53, %p54
    %p57 = scmp.ne.s32.totalorder %s40, %s56
    %p58 = scmp.eq.s32.totalorder %s18, 0
    %p59 = por %p57, %p58
    %s60 = ssub.s32 %s19, %s31
    %s61 = ssub.s32 %s20, %s27
    %s62 = sor.u32 %s60, %s61
    %p63 = scmp.eq.s32.totalorder %s62, 0
    %s65 = sadd.s32 %s64, 1
    %s66 = scalar_select %p63, %s64, %s65
    %p69 = pneg %p63
    %p70 = scmp.eq.s32.totalorder %s12, 5
    %p71 = por %p69, %p70
    %p72 = scmp.ne.s32.totalorder %s64, %s67
    %p73 = scmp.eq.s32.totalorder %s12, 0
    %p74 = por %p72, %p73
    %p75 = scmp.ne.s32.totalorder %s64, %s67
    %p76 = scmp.eq.s32.totalorder %s17, 5
    %p77 = por %p75, %p76
    %p78 = scmp.ne.s32.totalorder %s67, %s68
    %p79 = scmp.eq.s32.totalorder %s17, 0
    %p80 = por %p78, %p79
    %p81 = scmp.ne.s32.totalorder %s67, %s68
    %p82 = scmp.eq.s32.totalorder %s18, 5
    %p83 = por %p81, %p82
    %p85 = scmp.ne.s32.totalorder %s68, %s84
    %p86 = scmp.eq.s32.totalorder %s18, 0
    %p87 = por %p85, %p86
    %s88 = ssub.s32 %s20, %s27
    %p89 = scmp.eq.s32.totalorder %s88, 0
    %s91 = sadd.s32 %s90, 1
    %s92 = scalar_select %p89, %s90, %s91
    %p95 = pneg %p89
    %p96 = scmp.eq.s32.totalorder %s12, 5
    %p97 = por %p95, %p96
    %p98 = scmp.ne.s32.totalorder %s90, %s93
    %p99 = scmp.eq.s32.totalorder %s12, 0
    %p100 = por %p98, %p99
    %p101 = scmp.ne.s32.totalorder %s90, %s93
    %p102 = scmp.eq.s32.totalorder %s17, 5
    %p103 = por %p101, %p102
    %p104 = scmp.ne.s32.totalorder %s93, %s94
    %p105 = scmp.eq.s32.totalorder %s17, 0
    %p106 = por %p104, %p105
    %p107 = scmp.ne.s32.totalorder %s93, %s94
    %p108 = scmp.eq.s32.totalorder %s18, 5
    %p109 = por %p107, %p108
    %p111 = scmp.ne.s32.totalorder %s94, %s110
    %p112 = scmp.eq.s32.totalorder %s18, 0
    %p113 = por %p111, %p112
    %s114 = ssub.s32 %s20, %s27
    %p115 = scmp.eq.s32.totalorder %s114, 0
    %s117 = sadd.s32 %s116, 1
    %s118 = scalar_select %p115, %s116, %s117
    %p121 = pneg %p115
    %p122 = scmp.eq.s32.totalorder %s12, 5
    %p123 = por %p121, %p122
    %p124 = scmp.ne.s32.totalorder %s116, %s119
    %p125 = scmp.eq.s32.totalorder %s12, 0
    %p126 = por %p124, %p125
    %p127 = scmp.ne.s32.totalorder %s116, %s119
    %p128 = scmp.eq.s32.totalorder %s17, 5
    %p129 = por %p127, %p128
    %p130 = scmp.ne.s32.totalorder %s119, %s120
    %p131 = scmp.eq.s32.totalorder %s17, 0
    %p132 = por %p130, %p131
    %p133 = scmp.ne.s32.totalorder %s119, %s120
    %p134 = scmp.eq.s32.totalorder %s18, 5
    %p135 = por %p133, %p134
    %p137 = scmp.ne.s32.totalorder %s120, %s136
    %p138 = scmp.eq.s32.totalorder %s18, 0
    %p139 = por %p137, %p138
    %s140 = ssub.s32 %s20, %s27
    %p141 = scmp.eq.s32.totalorder %s140, 0
    %s143 = sadd.s32 %s142, 1
    %s144 = scalar_select %p141, %s142, %s143
    %p147 = pneg %p141
    %p148 = scmp.eq.s32.totalorder %s12, 5
    %p149 = por %p147, %p148
    %p150 = scmp.ne.s32.totalorder %s142, %s145
    %p151 = scmp.eq.s32.totalorder %s12, 0
    %p152 = por %p150, %p151
    %p153 = scmp.ne.s32.totalorder %s142, %s145
    %p154 = scmp.eq.s32.totalorder %s17, 5
    %p155 = por %p153, %p154
    %p156 = scmp.ne.s32.totalorder %s145, %s146
    %p157 = scmp.eq.s32.totalorder %s17, 0
    %p158 = por %p156, %p157
    %p159 = scmp.ne.s32.totalorder %s145, %s146
    %p160 = scmp.eq.s32.totalorder %s18, 5
    %p161 = por %p159, %p160
    %p163 = scmp.ne.s32.totalorder %s146, %s162
    %p164 = scmp.eq.s32.totalorder %s18, 0
    %p165 = por %p163, %p164
    %s167 = sadd.s32 %s166, 1
    %p170 = scmp.eq.s32.totalorder %s12, 5
    %p171 = scmp.ne.s32.totalorder %s166, %s168
    %p172 = scmp.eq.s32.totalorder %s12, 0
    %p173 = por %p171, %p172
    %p174 = scmp.ne.s32.totalorder %s166, %s168
    %p175 = scmp.eq.s32.totalorder %s17, 5
    %p176 = por %p174, %p175
    %p177 = scmp.ne.s32.totalorder %s168, %s169
    %p178 = scmp.eq.s32.totalorder %s17, 0
    %p179 = por %p177, %p178
    %p180 = scmp.ne.s32.totalorder %s168, %s169
    %p181 = scmp.eq.s32.totalorder %s18, 5
    %p182 = por %p180, %p181
    %p184 = scmp.ne.s32.totalorder %s169, %s183
    %p185 = scmp.eq.s32.totalorder %s18, 0
    %p186 = por %p184, %p185
    %s187 = ssub.s32 %s19, %s31
    %p188 = scmp.eq.s32.totalorder %s187, 0
    %s190 = sadd.s32 %s189, 1
    %s191 = scalar_select %p188, %s189, %s190
    %p194 = pneg %p188
    %p195 = scmp.eq.s32.totalorder %s12, 5
    %p196 = por %p194, %p195
    %p197 = scmp.ne.s32.totalorder %s189, %s192
    %p198 = scmp.eq.s32.totalorder %s12, 0
    %p199 = por %p197, %p198
    %p200 = scmp.ne.s32.totalorder %s189, %s192
    %p201 = scmp.eq.s32.totalorder %s17, 5
    %p202 = por %p200, %p201
    %p203 = scmp.ne.s32.totalorder %s192, %s193
    %p204 = scmp.eq.s32.totalorder %s17, 0
    %p205 = por %p203, %p204
    %p206 = scmp.ne.s32.totalorder %s192, %s193
    %p207 = scmp.eq.s32.totalorder %s18, 5
    %p208 = por %p206, %p207
    %p210 = scmp.ne.s32.totalorder %s193, %s209
    %p211 = scmp.eq.s32.totalorder %s18, 0
    %p212 = por %p210, %p211
    %p213 = scmp.le.s32.totalorder 1, %s12
    %p214 = scmp.lt.s32.totalorder %s12, 7
    %p215 = pnand %p213, %p214
    %p216 = pneg %p215
    // Predicated region
    $region9: #{set_criterion_forward.1} parent=5 // pred_check
      _
    $region10: #{set_criterion_forward.1} parent=5 // pred_check_branch
      %218 = sbr.rel (%p215) target = $region12
    $region11: #{set_criterion_forward.1} parent=5 // pred_region
      %s219 = ssub.s32 %s12, 1
      // Predicated region
      $region13: #{set_criterion_forward.1} parent=11 // pred_check
        %p220 = pneg %p179
      $region14: #{set_criterion_forward.1} parent=11 // pred_check_branch
        %222 = sbr.rel (%p220) target = $region16
      $region15: #{set_criterion_forward.1} parent=11 // pred_region
        _
      $region16: #{set_criterion_forward.1} parent=11 // pred_fallthru
        _
    $region12: #{set_criterion_forward.1} parent=5 // pred_fallthru
      _
    %p223 = scmp.lt.s32.totalorder %s12, 6
    // Predicated region
    $region17: #{set_criterion_forward.1} parent=5 // pred_check
      %p224 = pneg %p223
    $region18: #{set_criterion_forward.1} parent=5 // pred_check_branch
      %226 = sbr.rel (%p224) target = $region20
    $region19: #{set_criterion_forward.1} parent=5 // pred_region
      // Predicated region
      $region21: #{set_criterion_forward.1} parent=19 // pred_check
        %p227 = pneg %p46
      $region22: #{set_criterion_forward.1} parent=19 // pred_check_branch
        %229 = sbr.rel (%p227) target = $region24
      $region23: #{set_criterion_forward.1} parent=19 // pred_region
        %p230 = scmp.lt.s32.totalorder %s19, 2
        %s231 = scalar_select %p230, %s19, 2
        %p232 = scmp.lt.s32.totalorder %s20, 1
        %s233 = scalar_select %p232, %s20, 1
        %s234 = smul.addr %s231, 2
        %s235 = sadd.s32 %s233, %s234
        %s236 = smul.addr %s235, 8
        %s237 = scalar_lea.vmem %s0, %s236
      $region24: #{set_criterion_forward.1} parent=19 // pred_fallthru
        _
      // Predicated region
      $region25: #{set_criterion_forward.1} parent=19 // pred_check
        %p238 = pneg %p74
      $region26: #{set_criterion_forward.1} parent=19 // pred_check_branch
        %240 = sbr.rel (%p238) target = $region28
      $region27: #{set_criterion_forward.1} parent=19 // pred_region
        %p241 = scmp.lt.s32.totalorder %s19, 2
        %s242 = scalar_select %p241, %s19, 2
        %p243 = scmp.lt.s32.totalorder %s20, 1
        %s244 = scalar_select %p243, %s20, 1
        %s245 = smul.addr %s242, 2
        %s246 = sadd.s32 %s244, %s245
        %s247 = smul.addr %s246, 8
        %s248 = scalar_lea.vmem %s1, %s247
      $region28: #{set_criterion_forward.1} parent=19 // pred_fallthru
        _
      // Predicated region
      $region29: #{set_criterion_forward.1} parent=19 // pred_check
        %p249 = pneg %p100
      $region30: #{set_criterion_forward.1} parent=19 // pred_check_branch
        %251 = sbr.rel (%p249) target = $region32
      $region31: #{set_criterion_forward.1} parent=19 // pred_region
        %p252 = scmp.lt.s32.totalorder %s20, 1
        %s253 = scalar_select %p252, %s20, 1
        %s254 = smul.addr %s253, 4
        %s255 = scalar_lea.vmem %s2, %s254
      $region32: #{set_criterion_forward.1} parent=19 // pred_fallthru
        _
      // Predicated region
      $region33: #{set_criterion_forward.1} parent=19 // pred_check
        %p256 = pneg %p126
      $region34: #{set_criterion_forward.1} parent=19 // pred_check_branch
        %258 = sbr.rel (%p256) target = $region36
      $region35: #{set_criterion_forward.1} parent=19 // pred_region
        %p259 = scmp.lt.s32.totalorder %s20, 1
        %s260 = scalar_select %p259, %s20, 1
        %s261 = smul.addr %s260, 4
        %s262 = scalar_lea.vmem %s3, %s261
      $region36: #{set_criterion_forward.1} parent=19 // pred_fallthru
        _
      // Predicated region
      $region37: #{set_criterion_forward.1} parent=19 // pred_check
        %p263 = pneg %p152
      $region38: #{set_criterion_forward.1} parent=19 // pred_check_branch
        %265 = sbr.rel (%p263) target = $region40
      $region39: #{set_criterion_forward.1} parent=19 // pred_region
        %p266 = scmp.lt.s32.totalorder %s20, 1
        %s267 = scalar_select %p266, %s20, 1
        %s268 = smul.addr %s267, 8
        %s269 = scalar_lea.vmem %s4, %s268
      $region40: #{set_criterion_forward.1} parent=19 // pred_fallthru
        _
    $region20: #{set_criterion_forward.1} parent=5 // pred_fallthru
      _
    %p270 = scmp.le.s32.totalorder 1, %s12
    %p271 = scmp.lt.s32.totalorder %s12, 7
    %p272 = pnand %p270, %p271
    %p273 = pneg %p272
    // Predicated region
    $region41: #{set_criterion_forward.1} parent=5 // pred_check
      _
    $region42: #{set_criterion_forward.1} parent=5 // pred_check_branch
      %275 = sbr.rel (%p272) target = $region44
    $region43: #{set_criterion_forward.1} parent=5 // pred_region
      %s276 = ssub.s32 %s12, 1
      %p277 = scmp.lt.s32.totalorder %s21, 2
      %s278 = scalar_select %p277, %s21, 2
      %p279 = scmp.lt.s32.totalorder %s22, 1
      %s280 = scalar_select %p279, %s22, 1
      %s281 = smul.addr %s278, 2
      %s282 = sadd.s32 %s280, %s281
      %s283 = smul.addr %s282, 8
      %s284 = scalar_lea.vmem %s0, %s283
      %p285 = pneg %p52
      %p286 = pneg %p49
      %p287 = scmp.lt.s32.totalorder %s21, 2
      %s288 = scalar_select %p287, %s21, 2
      %p289 = scmp.lt.s32.totalorder %s22, 1
      %s290 = scalar_select %p289, %s22, 1
      %s291 = smul.addr %s288, 2
      %s292 = sadd.s32 %s290, %s291
      %s293 = smul.addr %s292, 8
      %s294 = scalar_lea.vmem %s1, %s293
      %p295 = pneg %p80
      %p296 = pneg %p77
      %p297 = scmp.lt.s32.totalorder %s22, 1
      %s298 = scalar_select %p297, %s22, 1
      %s299 = smul.addr %s298, 4
      %s300 = scalar_lea.vmem %s2, %s299
      %p301 = pneg %p106
      %p302 = pneg %p103
      %p303 = scmp.lt.s32.totalorder %s22, 1
      %s304 = scalar_select %p303, %s22, 1
      %s305 = smul.addr %s304, 4
      %s306 = scalar_lea.vmem %s3, %s305
      %p307 = pneg %p132
      %p308 = pneg %p129
      %p309 = scmp.lt.s32.totalorder %s22, 1
      %s310 = scalar_select %p309, %s22, 1
      %s311 = smul.addr %s310, 8
      %s312 = scalar_lea.vmem %s4, %s311
      %p313 = pneg %p158
      %p314 = pneg %p155
      %p315 = pneg %p179
      %p316 = pneg %p176
      %p317 = pneg %p205
      %p318 = pneg %p202
      %p319 = scmp.lt.s32.totalorder %s21, 2
      %s320 = scalar_select %p319, %s21, 2
      %s321 = scalar_lea.vmem %s6, %s320
      %p322 = scmp.lt.s32.totalorder %s21, 2
      %s323 = scalar_select %p322, %s21, 2
      %p324 = scmp.lt.s32.totalorder %s22, 1
      %s325 = scalar_select %p324, %s22, 1
      %s326 = smul.addr %s323, 2
      %s327 = sadd.s32 %s325, %s326
      %s328 = smul.addr %s327, 8
      %s329 = scalar_lea.vmem %s0, %s328
      %p330 = scmp.lt.s32.totalorder %s21, 2
      %s331 = scalar_select %p330, %s21, 2
      %p332 = scmp.lt.s32.totalorder %s22, 1
      %s333 = scalar_select %p332, %s22, 1
      %s334 = smul.addr %s331, 2
      %s335 = sadd.s32 %s333, %s334
      %s336 = smul.addr %s335, 8
      %s337 = scalar_lea.vmem %s1, %s336
      %p338 = scmp.lt.s32.totalorder %s22, 1
      %s339 = scalar_select %p338, %s22, 1
      %s340 = smul.addr %s339, 4
      %s341 = scalar_lea.vmem %s2, %s340
      %p342 = scmp.lt.s32.totalorder %s22, 1
      %s343 = scalar_select %p342, %s22, 1
      %s344 = smul.addr %s343, 4
      %s345 = scalar_lea.vmem %s3, %s344
      %p346 = scmp.lt.s32.totalorder %s22, 1
      %s347 = scalar_select %p346, %s22, 1
      %s348 = smul.addr %s347, 8
      %s349 = scalar_lea.vmem %s4, %s348
      %p350 = scmp.lt.s32.totalorder %s21, 2
      %s351 = scalar_select %p350, %s21, 2
      %s352 = scalar_lea.vmem %s6, %s351
      %v353 = vld [vmem:[%s329] sm:$0xff]
      %v354 = vld [vmem:[%s337] sm:$0xff]
      %v355 = vld [vmem:[%s341] sm:$0xf]
      %v356 = vld [vmem:[%s345] sm:$0x7]
      %v357 = vld [vmem:[%s349] sm:$0x1f]
      %v358 = vmul.f32 %v354, 0.5
      %360 = vrot.lane.b32.xlu0 %v358, 126
      %v361 = vpop.permute.xlu0 %360
      %v363 = vsub.f32 %v354, %v361
      %v364 = vadd.f32 %v354, %v361
      %v365 = vmul.f32 %v355, 0.5
      %v367 = vrot.slane %v365, 2
      %v369 = vsub.f32 %v355, %v367
      %v370 = vadd.f32 %v355, %v367
      %372 = vset.pattern.permute.xlu0 0
      %373 = vperm.xlu0 %372, %v364
      %v374 = vpop.permute.xlu0 %373
      %v376 = vlaneseq
      %v377 = vshrl.u32 %v376, 7
      %v378 = vsub.s32 0, %v377
      %v379 = vrot.slane %v370, %v378
      %v380 = vmin.f32 %v374, %v379
      %382 = vset.pattern.permute.xlu0 0
      %383 = vperm.xlu0 %382, %v363
      %v384 = vpop.permute.xlu0 %383
      %v386 = vlaneseq
      %v387 = vshrl.u32 %v386, 7
      %v388 = vsub.s32 0, %v387
      %v389 = vrot.slane %v369, %v388
      %v390 = vmax.f32 %v384, %v389
      %v391 = vsub.f32 %v380, %v390
      %v392 = vmax.f32 %v391, 0.0
      %393 = vset.pattern.permute.xlu0 1
      %394 = vperm.xlu0 %393, %v364
      %v395 = vpop.permute.xlu0 %394
      %v397 = vlaneseq
      %v398 = vshrl.u32 %v397, 7
      %v399 = vsub.s32 1, %v398
      %v400 = vrot.slane %v370, %v399
      %v401 = vmin.f32 %v395, %v400
      %402 = vset.pattern.permute.xlu0 1
      %403 = vperm.xlu0 %402, %v363
      %v404 = vpop.permute.xlu0 %403
      %v406 = vlaneseq
      %v407 = vshrl.u32 %v406, 7
      %v408 = vsub.s32 1, %v407
      %v409 = vrot.slane %v369, %v408
      %v410 = vmax.f32 %v404, %v409
      %v411 = vsub.f32 %v401, %v410
      %v412 = vmax.f32 %v411, 0.0
      %v413 = vmul.f32 %v392, %v412
      %v414 = vsub.f32 %v364, %v363
      %416 = vrot.lane.b32.xlu0 %v414, 127
      %v417 = vpop.permute.xlu0 %416
      %v419 = vmul.f32 %v414, %v417
      %v420 = vsub.f32 %v370, %v369
      %v422 = vrot.slane %v420, 1
      %v424 = vmul.f32 %v420, %v422
      %426 = vset.pattern.permute.xlu0 0
      %427 = vperm.xlu0 %426, %v419
      %v428 = vpop.permute.xlu0 %427
      %v430 = vlaneseq
      %v431 = vshrl.u32 %v430, 7
      %v432 = vsub.s32 0, %v431
      %v433 = vrot.slane %v424, %v432
      %v434 = vadd.f32 %v428, %v433
      %v435 = vsub.f32 %v434, %v413
      %v436 = vadd.f32 %v435, 1e-09
      %v437 = vrcp.pop %v436
      %v438 = vmul.f32 %v413, %v437
      %v439 = vmax.f32 %v374, %v379
      %v440 = vmin.f32 %v384, %v389
      %v441 = vsub.f32 %v439, %v440
      %v442 = vmax.f32 %v395, %v400
      %v443 = vmin.f32 %v404, %v409
      %v444 = vsub.f32 %v442, %v443
      %v445 = vmul.f32 %v441, %v444
      %v446 = vsub.f32 %v445, %v435
      %v447 = vadd.f32 %v445, 1e-09
      %v448 = vrcp.pop %v447
      %v449 = vmul.f32 %v446, %v448
      %v450 = vsub.f32 %v438, %v449
      %v451 = vsub.f32 0.0, %v353
      %v452 = vmul.f32 %v451, 1.442695
      %v453 = vpow.pop %v452
      %v454 = vadd.f32 %v453, 1.0
      %v455 = vrcp.pop %v454
      %v456 = vmul.f32 1.0, %v455
      %v457 = vmul.f32 %v456, %v456
      %v458 = vmul.f32 %v457, 0.75
      %v459 = vsub.f32 1.0, %v456
      %v460 = vadd.f32 %v459, 1e-08
      %v461 = vlog2.pop %v460
      %v462 = vmul.f32 %v461, 0.6931472
      %v463 = vsub.f32 0.0, %v462
      %v464 = vmul.f32 %v458, %v463
      %v465 = vmul.f32 %v459, %v459
      %v466 = vmul.f32 %v465, 0.25
      %v467 = vadd.f32 %v456, 1e-08
      %v468 = vlog2.pop %v467
      %v469 = vmul.f32 %v468, 0.6931472
      %v470 = vsub.f32 0.0, %v469
      %v471 = vmul.f32 %v466, %v470
      %v472 = vsub.f32 %v471, %v464
      %474 = vset.pattern.permute.xlu0 0
      %475 = vperm.xlu0 %474, %v472
      %v476 = vpop.permute.xlu0 %475
      %v478 = vlaneseq
      %v479 = vshrl.u32 %v478, 7
      %v480 = vsub.s32 0, %v479
      %v481 = vrot.slane %v357, %v480
      %v482 = vmul.f32 %v476, %v481
      %v483 = vadd.f32 %v482, 0.0
      %484 = vset.pattern.permute.xlu0 1
      %485 = vperm.xlu0 %484, %v472
      %v486 = vpop.permute.xlu0 %485
      %v488 = vlaneseq
      %v489 = vshrl.u32 %v488, 7
      %v490 = vsub.s32 1, %v489
      %v491 = vrot.slane %v357, %v490
      %v492 = vmul.f32 %v486, %v491
      %v493 = vadd.f32 %v483, %v492
      %494 = vset.pattern.permute.xlu0 2
      %495 = vperm.xlu0 %494, %v472
      %v496 = vpop.permute.xlu0 %495
      %v498 = vlaneseq
      %v499 = vshrl.u32 %v498, 7
      %v500 = vsub.s32 2, %v499
      %v501 = vrot.slane %v357, %v500
      %v502 = vmul.f32 %v496, %v501
      %v503 = vadd.f32 %v493, %v502
      %504 = vset.pattern.permute.xlu0 3
      %505 = vperm.xlu0 %504, %v472
      %v506 = vpop.permute.xlu0 %505
      %v508 = vlaneseq
      %v509 = vshrl.u32 %v508, 7
      %v510 = vsub.s32 3, %v509
      %v511 = vrot.slane %v357, %v510
      %v512 = vmul.f32 %v506, %v511
      %v513 = vadd.f32 %v503, %v512
      %514 = vset.pattern.permute.xlu0 4
      %515 = vperm.xlu0 %514, %v472
      %v516 = vpop.permute.xlu0 %515
      %v518 = vlaneseq
      %v519 = vshrl.u32 %v518, 7
      %v520 = vsub.s32 4, %v519
      %v521 = vrot.slane %v357, %v520
      %v522 = vmul.f32 %v516, %v521
      %v523 = vadd.f32 %v513, %v522
      %525 = vset.pattern.permute.xlu0 0
      %526 = vperm.xlu0 %525, %v354
      %v527 = vpop.permute.xlu0 %526
      %v529 = vlaneseq
      %v530 = vshrl.u32 %v529, 7
      %v531 = vsub.s32 0, %v530
      %v532 = vrot.slane %v355, %v531
      %v533 = vsub.f32 %v527, %v532
      %v534 = vand.u32 2147483647, %v533
      %v535 = vadd.f32 %v534, 0.0
      %536 = vset.pattern.permute.xlu0 1
      %537 = vperm.xlu0 %536, %v354
      %v538 = vpop.permute.xlu0 %537
      %v540 = vlaneseq
      %v541 = vshrl.u32 %v540, 7
      %v542 = vsub.s32 1, %v541
      %v543 = vrot.slane %v355, %v542
      %v544 = vsub.f32 %v538, %v543
      %v545 = vand.u32 2147483647, %v544
      %v546 = vadd.f32 %v535, %v545
      %547 = vset.pattern.permute.xlu0 2
      %548 = vperm.xlu0 %547, %v354
      %v549 = vpop.permute.xlu0 %548
      %v551 = vlaneseq
      %v552 = vshrl.u32 %v551, 7
      %v553 = vsub.s32 2, %v552
      %v554 = vrot.slane %v355, %v553
      %v555 = vsub.f32 %v549, %v554
      %v556 = vand.u32 2147483647, %v555
      %v557 = vadd.f32 %v546, %v556
      %558 = vset.pattern.permute.xlu0 3
      %559 = vperm.xlu0 %558, %v354
      %v560 = vpop.permute.xlu0 %559
      %v562 = vlaneseq
      %v563 = vshrl.u32 %v562, 7
      %v564 = vsub.s32 3, %v563
      %v565 = vrot.slane %v355, %v564
      %v566 = vsub.f32 %v560, %v565
      %v567 = vand.u32 2147483647, %v566
      %v568 = vadd.f32 %v557, %v567
      %v569 = vmul.f32 %v568, 5.0
      %v570 = vmul.f32 %v523, 2.0
      %v571 = vadd.f32 %v569, %v570
      %v572 = vmul.f32 %v450, 2.0
      %v573 = vsub.f32 %v571, %v572
      %v574 = vld [vmem:[%s5] sm:$0xff]
      %v575 = vld [vmem:[%s5 + $0x8] sm:$0xff]
      %v576 = vld [vmem:[%s5 + $0x10] sm:$0xff]
      %578 = vset.pattern.permute.xlu0 0
      %579 = vperm.xlu0 %578, %v573
      %v580 = vpop.permute.xlu0 %579
      %v582 = vmul.f32 %v574, %v580
      %v583 = vmul.f32 %v575, %v580
      %v584 = vmul.f32 %v576, %v580
      %v585 = vld [vmem:[%s5 + $0x18] sm:$0xff]
      %v586 = vld [vmem:[%s5 + $0x20] sm:$0xff]
      %v587 = vld [vmem:[%s5 + $0x28] sm:$0xff]
      %588 = vset.pattern.permute.xlu0 1
      %589 = vperm.xlu0 %588, %v573
      %v590 = vpop.permute.xlu0 %589
      %v592 = vmul.f32 %v585, %v590
      %v593 = vmul.f32 %v586, %v590
      %v594 = vmul.f32 %v587, %v590
      %v595 = vld [vmem:[%s5 + $0x30] sm:$0xff]
      %v596 = vld [vmem:[%s5 + $0x38] sm:$0xff]
      %v597 = vld [vmem:[%s5 + $0x40] sm:$0xff]
      %598 = vset.pattern.permute.xlu0 2
      %599 = vperm.xlu0 %598, %v573
      %v600 = vpop.permute.xlu0 %599
      %v602 = vmul.f32 %v595, %v600
      %v603 = vmul.f32 %v596, %v600
      %v604 = vmul.f32 %v597, %v600
      %v605 = vrot.slane %v582, 4
      %v606 = vadd.f32 %v582, %v605
      %v607 = vrot.slane %v606, 2
      %v608 = vadd.f32 %v606, %v607
      %v609 = vrot.slane %v608, 1
      %v610 = vadd.f32 %v608, %v609
      %v611 = vrot.slane %v583, 4
      %v612 = vadd.f32 %v583, %v611
      %v613 = vrot.slane %v612, 2
      %v614 = vadd.f32 %v612, %v613
      %v615 = vrot.slane %v614, 1
      %v616 = vadd.f32 %v614, %v615
      %v617 = vrot.slane %v584, 4
      %v618 = vadd.f32 %v584, %v617
      %v619 = vrot.slane %v618, 2
      %v620 = vadd.f32 %v618, %v619
      %v621 = vrot.slane %v620, 1
      %v622 = vadd.f32 %v620, %v621
      %v623 = vrot.slane %v592, 4
      %v624 = vadd.f32 %v592, %v623
      %v625 = vrot.slane %v624, 2
      %v626 = vadd.f32 %v624, %v625
      %v627 = vrot.slane %v626, 1
      %v628 = vadd.f32 %v626, %v627
      %v629 = vrot.slane %v593, 4
      %v630 = vadd.f32 %v593, %v629
      %v631 = vrot.slane %v630, 2
      %v632 = vadd.f32 %v630, %v631
      %v633 = vrot.slane %v632, 1
      %v634 = vadd.f32 %v632, %v633
      %v635 = vrot.slane %v594, 4
      %v636 = vadd.f32 %v594, %v635
      %v637 = vrot.slane %v636, 2
      %v638 = vadd.f32 %v636, %v637
      %v639 = vrot.slane %v638, 1
      %v640 = vadd.f32 %v638, %v639
      %v641 = vrot.slane %v602, 4
      %v642 = vadd.f32 %v602, %v641
      %v643 = vrot.slane %v642, 2
      %v644 = vadd.f32 %v642, %v643
      %v645 = vrot.slane %v644, 1
      %v646 = vadd.f32 %v644, %v645
      %v647 = vrot.slane %v603, 4
      %v648 = vadd.f32 %v603, %v647
      %v649 = vrot.slane %v648, 2
      %v650 = vadd.f32 %v648, %v649
      %v651 = vrot.slane %v650, 1
      %v652 = vadd.f32 %v650, %v651
      %v653 = vrot.slane %v604, 4
      %v654 = vadd.f32 %v604, %v653
      %v655 = vrot.slane %v654, 2
      %v656 = vadd.f32 %v654, %v655
      %v657 = vrot.slane %v656, 1
      %v658 = vadd.f32 %v656, %v657
      %v659 = vadd.f32 %v610, %v628
      %v660 = vadd.f32 %v616, %v634
      %v661 = vadd.f32 %v622, %v640
      %v662 = vadd.f32 %v659, %v646
      %v663 = vadd.f32 %v660, %v652
      %v664 = vadd.f32 %v661, %v658
      %v665 = vlaneseq
      %v666 = vand.u32 %v665, 127
      %v667 = vadd.s32 %v666, 128
      %v668 = vadd.s32 %v666, 256
      %v669 = vcvt.s32.f32 %v666
      %v670 = vcvt.s32.f32 %v667
      %v671 = vcvt.s32.f32 %v668
      %vm672 = vcmp.ge.f32.partialorder %v669, 336.0
      %vm673 = vcmp.ge.f32.partialorder %v670, 336.0
      %vm674 = vcmp.ge.f32.partialorder %v671, 336.0
      %v675 = vsel %vm672, 1e+30, 0.0
      %v676 = vsel %vm673, 1e+30, 0.0
      %v677 = vsel %vm674, 1e+30, 0.0
      %v678 = vadd.f32 %v662, %v675
      %v679 = vadd.f32 %v663, %v676
      %v680 = vadd.f32 %v664, %v677
      %v681 = vmin.f32 %v678, %v679
      %v682 = vmin.f32 %v681, %v680
      %683 = vmin.xlane.f32.xlu0 %v682
      %v684 = vpop.xlane.xlu0 %683
      %vm685 = vcmp.le.f32.partialorder %v678, %v684
      %vm686 = vcmp.le.f32.partialorder %v679, %v684
      %vm687 = vcmp.le.f32.partialorder %v680, %v684
      %v688 = vsel %vm685, %v669, 384.0
      %v689 = vsel %vm686, %v670, 384.0
      %v690 = vsel %vm687, %v671, 384.0
      %v691 = vmin.f32 %v688, %v689
      %v692 = vmin.f32 %v691, %v690
      %693 = vmin.xlane.f32.xlu0 %v692
      %v694 = vpop.xlane.xlu0 %693
      %vm695 = vcmp.eq.f32.partialorder %v669, %v694
      %vm696 = vcmp.eq.f32.partialorder %v670, %v694
      %vm697 = vcmp.eq.f32.partialorder %v671, %v694
      %v698 = vsel %vm695, 1, 0
      %v699 = vsel %vm696, 1, 0
      %v700 = vsel %vm697, 1, 0
      %v701 = vcvt.s32.f32 %v698
      %v702 = vcvt.s32.f32 %v699
      %v703 = vcvt.s32.f32 %v700
      %v704 = vmul.f32 %v701, 2.0
      %v705 = vmul.f32 %v702, 2.0
      %v706 = vmul.f32 %v703, 2.0
      %v707 = vmul.f32 %v701, 3.0
      %v708 = vmul.f32 %v702, 3.0
      %v709 = vmul.f32 %v703, 3.0
      %v710 = vld [vmem:[%s5] sm:$0xff]
      %v711 = vld [vmem:[%s5 + $0x8] sm:$0xff]
      %v712 = vld [vmem:[%s5 + $0x10] sm:$0xff]
      %v713 = vld [vmem:[%s5 + $0x18] sm:$0xff]
      %v714 = vld [vmem:[%s5 + $0x20] sm:$0xff]
      %v715 = vld [vmem:[%s5 + $0x28] sm:$0xff]
      %v716 = vlaneseq
      %v717 = vshrl.u32 %v716, 7
      %v718 = vsub.s32 0, %v717
      %v719 = vrot.slane %v701, %v718
      %v720 = vlaneseq
      %v721 = vshrl.u32 %v720, 7
      %v722 = vsub.s32 0, %v721
      %v723 = vrot.slane %v702, %v722
      %v724 = vlaneseq
      %v725 = vshrl.u32 %v724, 7
      %v726 = vsub.s32 0, %v725
      %v727 = vrot.slane %v703, %v726
      %v728 = vlaneseq
      %v729 = vshrl.u32 %v728, 7
      %v730 = vsub.s32 0, %v729
      %v731 = vrot.slane %v704, %v730
      %v732 = vlaneseq
      %v733 = vshrl.u32 %v732, 7
      %v734 = vsub.s32 0, %v733
      %v735 = vrot.slane %v705, %v734
      %v736 = vlaneseq
      %v737 = vshrl.u32 %v736, 7
      %v738 = vsub.s32 0, %v737
      %v739 = vrot.slane %v706, %v738
      %v740 = vlaneseq
      %v741 = vshrl.u32 %v740, 7
      %v742 = vsub.s32 0, %v741
      %v743 = vrot.slane %v707, %v742
      %v744 = vlaneseq
      %v745 = vshrl.u32 %v744, 7
      %v746 = vsub.s32 0, %v745
      %v747 = vrot.slane %v708, %v746
      %v748 = vlaneseq
      %v749 = vshrl.u32 %v748, 7
      %v750 = vsub.s32 0, %v749
      %v751 = vrot.slane %v709, %v750
      %v752 = vmul.f32 %v710, %v719
      %v753 = vmul.f32 %v711, %v723
      %v754 = vmul.f32 %v712, %v727
      %v755 = vmul.f32 %v713, %v731
      %v756 = vmul.f32 %v714, %v735
      %v757 = vmul.f32 %v715, %v739
      %v758 = vmul.f32 %v595, %v743
      %v759 = vmul.f32 %v596, %v747
      %v760 = vmul.f32 %v597, %v751
      %v761 = vadd.f32 %v752, %v753
      %v762 = vadd.f32 %v761, %v754
      %v763 = vadd.f32 %v762, %v755
      %v764 = vadd.f32 %v763, %v756
      %v765 = vadd.f32 %v764, %v757
      %v766 = vadd.f32 %v765, %v758
      %v767 = vadd.f32 %v766, %v759
      %v768 = vadd.f32 %v767, %v760
      %769 = vadd.xlane.f32.xlu0 %v768
      %v770 = vpop.xlane.xlu0 %769
      %vm771 = vcmp.eq.f32.partialorder %v770, 1.0
      %v772 = vsel %vm771, 1, 0
      %v773 = vcvt.s32.f32 %v772
      %v774 = vmul.f32 %v773, %v438
      %v775 = vadd.f32 %v774, 0.0
      %v776 = vmul.f32 %v773, %v568
      %v777 = vadd.f32 %v776, 0.0
      %v778 = vmul.f32 %v773, %v450
      %v779 = vadd.f32 %v778, 0.0
      %v780 = vlaneseq
      %v781 = vshrl.u32 %v780, 7
      %v782 = vsub.s32 0, %v781
      %v783 = vrot.slane %v356, %v782
      %v784 = vmul.f32 %v773, %v783
      %v785 = vadd.f32 %v784, 0.0
      %vm786 = vcmp.eq.f32.partialorder %v770, 2.0
      %v787 = vsel %vm786, 1, 0
      %v788 = vcvt.s32.f32 %v787
      %v789 = vmul.f32 %v788, %v438
      %791 = vrot.lane.b32.xlu0 %v789, 127
      %v792 = vpop.permute.xlu0 %791
      %v794 = vadd.f32 %v775, %v792
      %v795 = vmul.f32 %v788, %v568
      %797 = vrot.lane.b32.xlu0 %v795, 127
      %v798 = vpop.permute.xlu0 %797
      %v800 = vadd.f32 %v777, %v798
      %v801 = vmul.f32 %v788, %v450
      %803 = vrot.lane.b32.xlu0 %v801, 127
      %v804 = vpop.permute.xlu0 %803
      %v806 = vadd.f32 %v779, %v804
      %v807 = vlaneseq
      %v808 = vshrl.u32 %v807, 7
      %v809 = vsub.s32 1, %v808
      %v810 = vrot.slane %v356, %v809
      %v811 = vmul.f32 %v788, %v810
      %v812 = vadd.f32 %v785, %v811
      %vm813 = vcmp.eq.f32.partialorder %v770, 3.0
      %v814 = vsel %vm813, 1, 0
      %v815 = vcvt.s32.f32 %v814
      %v816 = vmul.f32 %v815, %v438
      %818 = vrot.lane.b32.xlu0 %v816, 126
      %v819 = vpop.permute.xlu0 %818
      %v821 = vadd.f32 %v794, %v819
      %v822 = vmul.f32 %v815, %v568
      %824 = vrot.lane.b32.xlu0 %v822, 126
      %v825 = vpop.permute.xlu0 %824
      %v827 = vadd.f32 %v800, %v825
      %v828 = vmul.f32 %v815, %v450
      %830 = vrot.lane.b32.xlu0 %v828, 126
      %v831 = vpop.permute.xlu0 %830
      %v833 = vadd.f32 %v806, %v831
      %v834 = vlaneseq
      %v835 = vshrl.u32 %v834, 7
      %v836 = vsub.s32 2, %v835
      %v837 = vrot.slane %v356, %v836
      %v838 = vmul.f32 %v815, %v837
      %v839 = vadd.f32 %v812, %v838
      %v840 = vadd.f32 %v827, 0.0
      %vm841 = vcmask 7168
      %v842 = vsel %vm841, %v840, 0.0
      %v843 = vrot.slane %v842, 4
      %v844 = vadd.f32 %v842, %v843
      %v845 = vrot.slane %v844, 2
      %v846 = vadd.f32 %v844, %v845
      %v847 = vrot.slane %v846, 1
      %v848 = vadd.f32 %v846, %v847
      %v849 = vadd.f32 %v833, 0.0
      %v850 = vsel %vm841, %v849, 0.0
      %v851 = vrot.slane %v850, 4
      %v852 = vadd.f32 %v850, %v851
      %v853 = vrot.slane %v852, 2
      %v854 = vadd.f32 %v852, %v853
      %v855 = vrot.slane %v854, 1
      %v856 = vadd.f32 %v854, %v855
      %v857 = vsub.f32 3.0, %v856
      %859 = vset.pattern.permute.xlu0 0
      %860 = vperm.xlu0 %859, %v821
      %v861 = vpop.permute.xlu0 %860
      %v863 = vmul.f32 %v861, %v839
      %v864 = vsub.f32 1.0, %v839
      %v865 = vmul.f32 %v458, %v864
      %v866 = vadd.f32 %v865, %v863
      %v867 = vmax.f32 %v353, 0.0
      %v868 = vmul.f32 %v353, %v863
      %v869 = vsub.f32 %v867, %v868
      %v870 = vand.u32 2147483647, %v353
      %v871 = vsub.f32 0.0, %v870
      %v872 = vmul.f32 %v871, 1.442695
      %v873 = vpow.pop %v872
      %v874 = vadd.f32 %v873, 1.0
      %v875 = vlog2.pop %v874
      %v876 = vmul.f32 %v875, 0.6931472
      %v877 = vadd.f32 %v869, %v876
      %v878 = vmul.f32 %v866, %v877
      %vm879 = vcmask 39936
      %v880 = vsel %vm879, %v878, 0.0
      %881 = vadd.xlane.f32.xlu0 %v880
      %v882 = vpop.xlane.xlu0 %881
      %v883 = vrot.slane %v882, 4
      %v884 = vadd.f32 %v882, %v883
      %v885 = vrot.slane %v884, 2
      %v886 = vadd.f32 %v884, %v885
      %v887 = vrot.slane %v886, 1
      %v888 = vadd.f32 %v886, %v887
      %vm889 = vcmask 31744
      %v890 = vsel %vm889, %v353, -inf
      %891 = vmax.xlane.f32.xlu0 %v890
      %v892 = vpop.xlane.xlu0 %891
      %vm893 = vcmp.ge.f32.partialorder %v892, %v353
      %v894 = vsel %vm893, 1, 0
      %v895 = vcvt.s32.f32 %v894
      %v896 = vadd.f32 %v895, 0.0
      %vm897 = vcmask 39968
      %v898 = vsel %vm897, %v896, 0.0
      %v899 = vrot.slane %v898, 4
      %v900 = vadd.f32 %v898, %v899
      %v901 = vrot.slane %v900, 2
      %v902 = vadd.f32 %v900, %v901
      %v903 = vrot.slane %v902, 1
      %v904 = vadd.f32 %v902, %v903
      %v905 = vsub.f32 %v904, 3.0
      %v906 = vand.u32 2147483647, %v905
      %vm907 = vcmp.eq.s32.totalorder %v666, 0
      %vm908 = vcmp.eq.s32.totalorder %v666, 1
      %vm909 = vcmp.eq.s32.totalorder %v666, 2
      %vm910 = vcmp.eq.s32.totalorder %v666, 3
      %912 = vset.pattern.permute.xlu0 4
      %913 = vperm.xlu0 %912, %v906
      %v914 = vpop.permute.xlu0 %913
      %v916 = vsel %vm910, %v914, 0.0
      %918 = vset.pattern.permute.xlu0 0
      %919 = vperm.xlu0 %918, %v857
      %v920 = vpop.permute.xlu0 %919
      %v922 = vsel %vm909, %v920, %v916
      %924 = vset.pattern.permute.xlu0 0
      %925 = vperm.xlu0 %924, %v848
      %v926 = vpop.permute.xlu0 %925
      %v928 = vsel %vm908, %v926, %v922
      %v929 = vsel %vm907, %v888, %v928
      %p930 = scmp.eq.s32.totalorder %s22, 0
      // Predicated region
      $region45: #{set_criterion_forward.1} parent=43 // pred_check
        %p931 = pneg %p930
      $region46: #{set_criterion_forward.1} parent=43 // pred_check_branch
        %933 = sbr.rel (%p931) target = $region48
      $region47: #{set_criterion_forward.1} parent=43 // pred_region
        %934 = vst [vmem:[%s352] sm:$0x1] 0.0
      $region48: #{set_criterion_forward.1} parent=43 // pred_fallthru
        _
      %v935 = vld [vmem:[%s352] sm:$0x1]
      %v936 = vadd.f32 %v935, %v929
      %937 = vst [vmem:[%s352] sm:$0x1] %v936
      %p938 = scmp.lt.s32.totalorder %s21, 2
      %s939 = scalar_select %p938, %s21, 2
      %s940 = scalar_lea.vmem %s6, %s939
      // Predicated region
      $region49: #{set_criterion_forward.1} parent=43 // pred_check
        %p941 = pneg %p202
      $region50: #{set_criterion_forward.1} parent=43 // pred_check_branch
        %943 = sbr.rel (%p941) target = $region52
      $region51: #{set_criterion_forward.1} parent=43 // pred_region
        _
      $region52: #{set_criterion_forward.1} parent=43 // pred_fallthru
        _
    $region44: #{set_criterion_forward.1} parent=5 // pred_fallthru
      _
    %p944 = scmp.le.s32.totalorder 2, %s12
    // Predicated region
    $region53: #{set_criterion_forward.1} parent=5 // pred_check
      %p945 = pneg %p944
    $region54: #{set_criterion_forward.1} parent=5 // pred_check_branch
      %947 = sbr.rel (%p945) target = $region56
    $region55: #{set_criterion_forward.1} parent=5 // pred_region
      %s948 = ssub.s32 %s12, 2
      // Predicated region
      $region57: #{set_criterion_forward.1} parent=55 // pred_check
        %p949 = pneg %p208
      $region58: #{set_criterion_forward.1} parent=55 // pred_check_branch
        %951 = sbr.rel (%p949) target = $region60
      $region59: #{set_criterion_forward.1} parent=55 // pred_region
        %p952 = scmp.lt.s32.totalorder %s23, 2
        %s953 = scalar_select %p952, %s23, 2
        %s954 = scalar_lea.vmem %s6, %s953
      $region60: #{set_criterion_forward.1} parent=55 // pred_fallthru
        _
    $region56: #{set_criterion_forward.1} parent=5 // pred_fallthru
      _
  $region6: #{set_criterion_forward.1} parent=0 // loop_footer
    %s16 = sadd.s32 1, %s12
  $region7: #{set_criterion_forward.1} parent=0 // loop_footer_branch
    %11 = sbr.rel target = $region3
  $region8: #{set_criterion_forward.1} parent=0 // loop_exit
    _

</llo_original>
